<compile_context>
chip_gen: v6e
topology: v6e:2x2x1
jax: 0.10.0
libtpu: 0.0.40
codegen_flags: <defaults>
</compile_context>

<pallas_src>
import functools

import jax
import jax.numpy as jnp
from jax import lax
from jax.experimental import pallas as pl
from jax.experimental.pallas import tpu as pltpu


def _encoder_layer_kernel(xq_ref, xkv_ref, bias_ref,
                          wq_ref, wk_ref, wv_ref, wo_ref,
                          g1_ref, b1_ref,
                          w1_ref, bf1_ref, w2_ref, bf2_ref,
                          g2_ref, b2_ref,
                          out_ref,
                          k_scr, v_scr,
                          *, num_heads, eps=1e-5):
    f32 = jnp.float32
    bf16 = jnp.bfloat16

    # ---- K / V projections: once per batch element, carried across query
    #      tiles in bf16 VMEM scratch (qi grid axis is 'arbitrary'). ----
    @pl.when(pl.program_id(1) == 0)
    def _():
        xkv = xkv_ref[0]                                           # (S, D) bf16
        k_scr[...] = jnp.dot(xkv, wk_ref[...],
                             preferred_element_type=f32).astype(bf16)
        v_scr[...] = jnp.dot(xkv, wv_ref[...],
                             preferred_element_type=f32).astype(bf16)

    x_q = xq_ref[0]                                                # (TQ, D) f32
    TQ, D = x_q.shape
    S = k_scr.shape[0]
    dh = D // num_heads

    # attention scale 1/sqrt(dh) is folded into wq in the wrapper
    q = jnp.dot(x_q.astype(bf16), wq_ref[...], preferred_element_type=f32)

    # hoist the key-bias broadcast out of the per-head loop (emitted once)
    bias = jnp.broadcast_to(bias_ref[0], (TQ, S))                  # f32

    k = k_scr[...]                                                 # (S, D) bf16
    v = v_scr[...]                                                 # (S, D) bf16

    # ---- multi-head attention: head outputs are staged, the output
    #      projection runs once as a full-width (TQ,D)@(D,D) MXU matmul ----
    head_outs = []
    for h in range(num_heads):          # static unroll (small head count)
        sl = slice(h * dh, (h + 1) * dh)
        qh = q[:, sl].astype(bf16)                                 # (TQ, dh)
        kh = k[:, sl]                                              # (S,  dh)
        vh = v[:, sl]                                              # (S,  dh)

        # contract the last dim of BOTH operands -> no materialized K transpose
        s = lax.dot_general(qh, kh, (((1,), (1,)), ((), ())),
                            preferred_element_type=f32) + bias     # (TQ, S)
        s = s - jnp.max(s, axis=-1, keepdims=True)
        p = jnp.exp(s)
        p = p * pl.reciprocal(jnp.sum(p, axis=-1, keepdims=True), approx=True)

        head_outs.append(jnp.dot(p.astype(bf16), vh,
                                 preferred_element_type=f32).astype(bf16))

    attn = jnp.dot(jnp.concatenate(head_outs, axis=-1), wo_ref[...],
                   preferred_element_type=f32)                     # (TQ, D)

    # ---- residual + LayerNorm 1 (f32, dropout == identity at inference) ----
    y = x_q + attn
    mu = jnp.mean(y, axis=-1, keepdims=True)
    var = jnp.mean((y - mu) ** 2, axis=-1, keepdims=True)
    y = (y - mu) * lax.rsqrt(var + eps) * g1_ref[...] + b1_ref[...]

    # ---- feed-forward: output(relu(hidden(y))), bf16 MXU / f32 epilogue ----
    h1 = jnp.dot(y.astype(bf16), w1_ref[...], preferred_element_type=f32) + bf1_ref[...]
    h1 = jnp.maximum(h1, 0.0)
    f = jnp.dot(h1.astype(bf16), w2_ref[...], preferred_element_type=f32) + bf2_ref[...]

    # ---- residual + LayerNorm 2 (f32) ----
    z = y + f
    mu2 = jnp.mean(z, axis=-1, keepdims=True)
    var2 = jnp.mean((z - mu2) ** 2, axis=-1, keepdims=True)
    z = (z - mu2) * lax.rsqrt(var2 + eps) * g2_ref[...] + b2_ref[...]

    out_ref[0] = z.astype(out_ref.dtype)


def _vmem_budget_bytes():
    """Generation-aware VMEM budget: ~3/4 of physical (96 MiB on v5e/v6e, 48 MiB on v7x)."""
    try:
        cap = pltpu.get_tpu_info().vmem_capacity_bytes
    except Exception:  # hardware query unavailable -> conservative default
        cap = 64 * 1024 * 1024
    return min((cap * 3) // 4, 112 * 1024 * 1024)


def transformer_encoder_layer(inputs, params, num_heads, *, q_tile=None):
    """inputs = {'state': (B,S,D) f32, 'mask': (B,S) f32 (1=valid, 0=pad)}."""
    state = inputs['state']
    mask = inputs['mask']
    B, S, D = state.shape
    Hff = params['w1'].shape[1]
    assert D % num_heads == 0
    dh = D // num_heads

    if q_tile is None:
        # prefer 256 (fills the 256-wide MXU M-dim on v6e/v7x), else largest divisor
        q_tile = S
        for cand in (256, 128, 64, 32, 16, 8):
            if cand <= S and S % cand == 0:
                q_tile = cand
                break
    assert S % q_tile == 0 and (q_tile == S or q_tile % 8 == 0)
    nq = S // q_tile

    # additive key bias, shape (B, 1, S): 0 for valid keys, -1e9 for padded keys
    bias = jnp.where(mask > 0, 0.0, -1e9).astype(jnp.float32).reshape(B, 1, S)

    # MXU weights pre-cast to bf16 (halves their VMEM / DMA footprint);
    # LayerNorm params and Linear biases stay f32 (f32 epilogue math).
    bf16 = jnp.bfloat16
    scale = 1.0 / (dh ** 0.5)
    wq = (params['wq'] * scale).astype(bf16)   # fold attention scale into wq
    wk = params['wk'].astype(bf16)
    wv = params['wv'].astype(bf16)
    wo = params['wo'].astype(bf16)
    w1 = params['w1'].astype(bf16)
    w2 = params['w2'].astype(bf16)

    # KV path only ever feeds bf16 MXU matmuls -> ship it as bf16;
    # the query tile stays f32 for the residual / LayerNorm path.
    state_kv = state.astype(bf16)

    kernel = functools.partial(_encoder_layer_kernel, num_heads=num_heads)

    def run(single_buffer_weights):
        def const_spec(shape):
            # weight / LN-param blocks never change across the grid
            imap = lambda b, qi: (0,) * len(shape)
            if single_buffer_weights:
                return pl.BlockSpec(shape, imap, pipeline_mode=pl.Buffered(1))
            return pl.BlockSpec(shape, imap)

        return pl.pallas_call(
            kernel,
            out_shape=jax.ShapeDtypeStruct((B, S, D), state.dtype),
            grid=(B, nq),
            in_specs=[
                pl.BlockSpec((1, q_tile, D), lambda b, qi: (b, qi, 0)),  # f32 query tile
                pl.BlockSpec((1, S, D), lambda b, qi: (b, 0, 0)),        # bf16 KV rows (DMA once per b)
                pl.BlockSpec((1, 1, S), lambda b, qi: (b, 0, 0)),        # key bias
                const_spec((D, D)),    # wq (scale folded in)
                const_spec((D, D)),    # wk
                const_spec((D, D)),    # wv
                const_spec((D, D)),    # wo
                const_spec((1, D)),    # ln1 gamma
                const_spec((1, D)),    # ln1 beta
                const_spec((D, Hff)),  # ffn hidden W
                const_spec((1, Hff)),  # ffn hidden b
                const_spec((Hff, D)),  # ffn output W
                const_spec((1, D)),    # ffn output b
                const_spec((1, D)),    # ln2 gamma
                const_spec((1, D)),    # ln2 beta
            ],
            out_specs=pl.BlockSpec((1, q_tile, D), lambda b, qi: (b, qi, 0)),
            scratch_shapes=[pltpu.VMEM((S, D), bf16),    # K (carried across query tiles)
                            pltpu.VMEM((S, D), bf16)],   # V (carried across query tiles)
            compiler_params=pltpu.CompilerParams(
                # qi must be 'arbitrary': the K/V scratch is a carry across query tiles
                dimension_semantics=("parallel", "arbitrary"),
                vmem_limit_bytes=_vmem_budget_bytes(),
            ),
        )(state, state_kv, bias,
          wq, wk, wv, wo,
          params['g1'], params['b1'],
          w1, params['bf1'], w2, params['bf2'],
          params['g2'], params['b2'])

    try:
        out = run(True)
    except (TypeError, AttributeError):
        # jax version without BlockSpec.pipeline_mode / pl.Buffered support:
        # weights fall back to default double-buffering. Real lowering / VMEM
        # errors are NOT swallowed.
        out = run(False)

    return {'state': out, 'mask': mask}


def _xavier_uniform(key, shape, gain):
    fan_in, fan_out = shape
    a = gain * (6.0 / (fan_in + fan_out)) ** 0.5
    return jax.random.uniform(key, shape, jnp.float32, minval=-a, maxval=a)


def init_params(key, dim, hidden_dim):
    ks = jax.random.split(key, 8)
    relu_gain = 2.0 ** 0.5   # nn.init.calculate_gain('relu')
    lin_gain = 1.0           # nn.init.calculate_gain('linear')
    return {
        # attention projections (bias-free), stored (in, out)
        'wq': _xavier_uniform(ks[0], (dim, dim), lin_gain),
        'wk': _xavier_uniform(ks[1], (dim, dim), lin_gain),
        'wv': _xavier_uniform(ks[2], (dim, dim), lin_gain),
        'wo': _xavier_uniform(ks[3], (dim, dim), lin_gain),
        # LayerNorm after attention (reset: gamma=1, beta=0)
        'g1': jnp.ones((1, dim), jnp.float32),
        'b1': jnp.zeros((1, dim), jnp.float32),
        # FFN: hidden (xavier w/ relu gain, bias 0), output (xavier, bias 0)
        'w1':  _xavier_uniform(ks[4], (dim, hidden_dim), relu_gain),
        'bf1': jnp.zeros((1, hidden_dim), jnp.float32),
        'w2':  _xavier_uniform(ks[5], (hidden_dim, dim), lin_gain),
        'bf2': jnp.zeros((1, dim), jnp.float32),
        # LayerNorm after FFN
        'g2': jnp.ones((1, dim), jnp.float32),
        'b2': jnp.zeros((1, dim), jnp.float32),
    }


def _reference(inputs, params, num_heads, eps=1e-5):
    """Pure-JAX f32 reference of the same forward pass (sanity check)."""
    x = inputs['state']
    mask = inputs['mask']
    B, S, D = x.shape
    dh = D // num_heads
    bias = jnp.where(mask > 0, 0.0, -1e9)[:, None, None, :]          # (B,1,1,S)

    rs = lambda t: t.reshape(B, S, num_heads, dh).transpose(0, 2, 1, 3)
    q = rs(x @ params['wq']) / (dh ** 0.5)
    k = rs(x @ params['wk'])
    v = rs(x @ params['wv'])
    s = jnp.einsum('bhqd,bhkd->bhqk', q, k) + bias
    p = jax.nn.softmax(s, axis=-1)
    attn = jnp.einsum('bhqk,bhkd->bhqd', p, v).transpose(0, 2, 1, 3).reshape(B, S, D)
    attn = attn @ params['wo']

    def ln(t, g, b):
        mu = jnp.mean(t, axis=-1, keepdims=True)
        var = jnp.mean((t - mu) ** 2, axis=-1, keepdims=True)
        return (t - mu) * jax.lax.rsqrt(var + eps) * g + b

    y = ln(x + attn, params['g1'], params['b1'])
    f = jnp.maximum(y @ params['w1'] + params['bf1'], 0.0) @ params['w2'] + params['bf2']
    return ln(y + f, params['g2'], params['b2'])


if __name__ == "__main__":
    def check(B, S, D, Hff, num_heads, q_tile, tol):
        key = jax.random.PRNGKey(0)
        k_state, k_params = jax.random.split(key)
        state = jax.random.normal(k_state, (B, S, D), jnp.float32)
        # second sequence has its last 3 positions padded
        mask = jnp.ones((B, S), jnp.float32).at[1, -3:].set(0.0)
        params = init_params(k_params, D, Hff)
        inputs = {'state': state, 'mask': mask}
        out = transformer_encoder_layer(inputs, params, num_heads, q_tile=q_tile)
        jax.block_until_ready(out['state'])
        ref = _reference(inputs, params, num_heads)
        err = float(jnp.max(jnp.abs(out['state'] - ref)))
        # bf16 MXU matmuls + approx softmax reciprocal vs f32 reference -> loosened tol
        assert err < tol, f"mismatch vs reference (B={B},S={S},D={D}): max abs err = {err}"
        return err

    # small smoke-test shapes (heavily padded layouts), exercises the K/V carry (nq=2)
    check(B=2, S=16, D=32, Hff=64, num_heads=4, q_tile=8, tol=1e-1)
    # lane-aligned check (D / hidden multiples of 128), also exercises the carry (nq=2)
    check(B=2, S=128, D=128, Hff=256, num_heads=4, q_tile=64, tol=2e-1)

    print("KERNEL_OK")
</pallas_src>

<mosaic_0001>
module attributes {stable_mosaic.version = 11 : i64} {
  func.func @_encoder_layer_kernel(%arg0: i32, %arg1: i32, %arg2: memref<1x8x32xf32, #tpu.memory_space<vmem>>, %arg3: memref<1x16x32xbf16, #tpu.memory_space<vmem>>, %arg4: memref<1x1x16xf32, #tpu.memory_space<vmem>>, %arg5: memref<32x32xbf16, #tpu.memory_space<vmem>>, %arg6: memref<32x32xbf16, #tpu.memory_space<vmem>>, %arg7: memref<32x32xbf16, #tpu.memory_space<vmem>>, %arg8: memref<32x32xbf16, #tpu.memory_space<vmem>>, %arg9: memref<1x32xf32, #tpu.memory_space<vmem>>, %arg10: memref<1x32xf32, #tpu.memory_space<vmem>>, %arg11: memref<32x64xbf16, #tpu.memory_space<vmem>>, %arg12: memref<1x64xf32, #tpu.memory_space<vmem>>, %arg13: memref<64x32xbf16, #tpu.memory_space<vmem>>, %arg14: memref<1x32xf32, #tpu.memory_space<vmem>>, %arg15: memref<1x32xf32, #tpu.memory_space<vmem>>, %arg16: memref<1x32xf32, #tpu.memory_space<vmem>>, %arg17: memref<1x8x32xf32, #tpu.memory_space<vmem>>, %arg18: memref<16x32xbf16, #tpu.memory_space<vmem>>, %arg19: memref<16x32xbf16, #tpu.memory_space<vmem>>) attributes {dimension_semantics = [#tpu.dimension_semantics<parallel>, #tpu.dimension_semantics<arbitrary>], iteration_bounds = array<i64: 2, 2>, scalar_prefetch = 0 : i64, scratch_operands = 2 : i64, tpu.core_type = #tpu.core_type<tc>, window_params = [{transform_indices = @transform_0, window_bounds = array<i64: 1, 8, 32>}, {transform_indices = @transform_1, window_bounds = array<i64: 1, 16, 32>}, {transform_indices = @transform_2, window_bounds = array<i64: 1, 1, 16>}, {pipeline_mode = #tpu.pipeline_mode<synchronous>, transform_indices = @transform_3, window_bounds = array<i64: 32, 32>}, {pipeline_mode = #tpu.pipeline_mode<synchronous>, transform_indices = @transform_4, window_bounds = array<i64: 32, 32>}, {pipeline_mode = #tpu.pipeline_mode<synchronous>, transform_indices = @transform_5, window_bounds = array<i64: 32, 32>}, {pipeline_mode = #tpu.pipeline_mode<synchronous>, transform_indices = @transform_6, window_bounds = array<i64: 32, 32>}, {pipeline_mode = #tpu.pipeline_mode<synchronous>, transform_indices = @transform_7, window_bounds = array<i64: 1, 32>}, {pipeline_mode = #tpu.pipeline_mode<synchronous>, transform_indices = @transform_8, window_bounds = array<i64: 1, 32>}, {pipeline_mode = #tpu.pipeline_mode<synchronous>, transform_indices = @transform_9, window_bounds = array<i64: 32, 64>}, {pipeline_mode = #tpu.pipeline_mode<synchronous>, transform_indices = @transform_10, window_bounds = array<i64: 1, 64>}, {pipeline_mode = #tpu.pipeline_mode<synchronous>, transform_indices = @transform_11, window_bounds = array<i64: 64, 32>}, {pipeline_mode = #tpu.pipeline_mode<synchronous>, transform_indices = @transform_12, window_bounds = array<i64: 1, 32>}, {pipeline_mode = #tpu.pipeline_mode<synchronous>, transform_indices = @transform_13, window_bounds = array<i64: 1, 32>}, {pipeline_mode = #tpu.pipeline_mode<synchronous>, transform_indices = @transform_14, window_bounds = array<i64: 1, 32>}, {transform_indices = @transform_15, window_bounds = array<i64: 1, 8, 32>}]} {
    %c0_i32 = arith.constant 0 : i32
    %0 = arith.cmpi eq, %arg1, %c0_i32 : i32
    %1 = arith.extui %0 : i1 to i32
    %c0_i32_0 = arith.constant 0 : i32
    %2 = arith.cmpi ne, %1, %c0_i32_0 : i32
    scf.if %2 {
      %c0_63 = arith.constant 0 : index
      %c0_64 = arith.constant 0 : index
      %c0_65 = arith.constant 0 : index
      %160 = vector.load %arg3[%c0_63, %c0_64, %c0_65] : memref<1x16x32xbf16, #tpu.memory_space<vmem>>, vector<1x16x32xbf16>
      %161 = vector.shape_cast %160 : vector<1x16x32xbf16> to vector<16x32xbf16>
      %c0_66 = arith.constant 0 : index
      %c0_67 = arith.constant 0 : index
      %162 = vector.load %arg6[%c0_66, %c0_67] : memref<32x32xbf16, #tpu.memory_space<vmem>>, vector<32x32xbf16>
      %cst_68 = arith.constant dense<0.000000e+00> : vector<16x32xf32>
      %163 = tpu.matmul %161, %162, %cst_68 {dimension_numbers = #tpu.dot_dimension_numbers<[1], [0], [0], [1], [0, 0, 1, 1], [], []>} : vector<16x32xbf16>, vector<32x32xbf16>, vector<16x32xf32> -> vector<16x32xf32>
      %164 = arith.truncf %163 : vector<16x32xf32> to vector<16x32xbf16>
      %c0_69 = arith.constant 0 : index
      %c0_70 = arith.constant 0 : index
      %165 = vector.load %arg18[%c0_69, %c0_70] : memref<16x32xbf16, #tpu.memory_space<vmem>>, vector<16x32xbf16>
      tpu.vector_store %arg18[%c0_69, %c0_70], %164 {strides = array<i32>} : memref<16x32xbf16, #tpu.memory_space<vmem>>, vector<16x32xbf16>,
      %c0_71 = arith.constant 0 : index
      %c0_72 = arith.constant 0 : index
      %166 = vector.load %arg7[%c0_71, %c0_72] : memref<32x32xbf16, #tpu.memory_space<vmem>>, vector<32x32xbf16>
      %cst_73 = arith.constant dense<0.000000e+00> : vector<16x32xf32>
      %167 = tpu.matmul %161, %166, %cst_73 {dimension_numbers = #tpu.dot_dimension_numbers<[1], [0], [0], [1], [0, 0, 1, 1], [], []>} : vector<16x32xbf16>, vector<32x32xbf16>, vector<16x32xf32> -> vector<16x32xf32>
      %168 = arith.truncf %167 : vector<16x32xf32> to vector<16x32xbf16>
      %c0_74 = arith.constant 0 : index
      %c0_75 = arith.constant 0 : index
      %169 = vector.load %arg19[%c0_74, %c0_75] : memref<16x32xbf16, #tpu.memory_space<vmem>>, vector<16x32xbf16>
      tpu.vector_store %arg19[%c0_74, %c0_75], %168 {strides = array<i32>} : memref<16x32xbf16, #tpu.memory_space<vmem>>, vector<16x32xbf16>,
    } else {
    }
    %c0 = arith.constant 0 : index
    %c0_1 = arith.constant 0 : index
    %c0_2 = arith.constant 0 : index
    %3 = vector.load %arg2[%c0, %c0_1, %c0_2] : memref<1x8x32xf32, #tpu.memory_space<vmem>>, vector<1x8x32xf32>
    %4 = vector.shape_cast %3 : vector<1x8x32xf32> to vector<8x32xf32>
    %5 = arith.truncf %4 : vector<8x32xf32> to vector<8x32xbf16>
    %c0_3 = arith.constant 0 : index
    %c0_4 = arith.constant 0 : index
    %6 = vector.load %arg5[%c0_3, %c0_4] : memref<32x32xbf16, #tpu.memory_space<vmem>>, vector<32x32xbf16>
    %cst = arith.constant dense<0.000000e+00> : vector<8x32xf32>
    %7 = tpu.matmul %5, %6, %cst {dimension_numbers = #tpu.dot_dimension_numbers<[1], [0], [0], [1], [0, 0, 1, 1], [], []>} : vector<8x32xbf16>, vector<32x32xbf16>, vector<8x32xf32> -> vector<8x32xf32>
    %c0_5 = arith.constant 0 : index
    %c0_6 = arith.constant 0 : index
    %c0_7 = arith.constant 0 : index
    %8 = vector.load %arg4[%c0_5, %c0_6, %c0_7] : memref<1x1x16xf32, #tpu.memory_space<vmem>>, vector<1x1x16xf32>
    %9 = vector.shape_cast %8 : vector<1x1x16xf32> to vector<1x16xf32>
    %10 = vector.shape_cast %9 : vector<1x16xf32> to vector<1x16xf32>
    %11 = vector.broadcast %10 : vector<1x16xf32> to vector<8x16xf32>
    %c0_8 = arith.constant 0 : index
    %c0_9 = arith.constant 0 : index
    %12 = vector.load %arg18[%c0_8, %c0_9] : memref<16x32xbf16, #tpu.memory_space<vmem>>, vector<16x32xbf16>
    %c0_10 = arith.constant 0 : index
    %c0_11 = arith.constant 0 : index
    %13 = vector.load %arg19[%c0_10, %c0_11] : memref<16x32xbf16, #tpu.memory_space<vmem>>, vector<16x32xbf16>
    %14 = vector.extract_strided_slice %7 {offsets = [0, 0], sizes = [8, 8], strides = [1, 1]} : vector<8x32xf32> to vector<8x8xf32>
    %15 = arith.truncf %14 : vector<8x8xf32> to vector<8x8xbf16>
    %16 = vector.extract_strided_slice %12 {offsets = [0, 0], sizes = [16, 8], strides = [1, 1]} : vector<16x32xbf16> to vector<16x8xbf16>
    %17 = vector.extract_strided_slice %13 {offsets = [0, 0], sizes = [16, 8], strides = [1, 1]} : vector<16x32xbf16> to vector<16x8xbf16>
    %cst_12 = arith.constant dense<0.000000e+00> : vector<8x16xf32>
    %18 = tpu.matmul %15, %16, %cst_12 {dimension_numbers = #tpu.dot_dimension_numbers<[1], [1], [0], [0], [0, 0, 1, 0], [], []>} : vector<8x8xbf16>, vector<16x8xbf16>, vector<8x16xf32> -> vector<8x16xf32>
    %19 = arith.addf %18, %11 : vector<8x16xf32>
    %cst_13 = arith.constant dense<0xFF800000> : vector<8xf32>
    %20 = vector.multi_reduction <maximumf>, %19, %cst_13 [1] : vector<8x16xf32> to vector<8xf32>
    %21 = vector.shape_cast %20 : vector<8xf32> to vector<8x1xf32>
    %22 = vector.broadcast %21 : vector<8x1xf32> to vector<8x16xf32>
    %23 = arith.subf %19, %22 : vector<8x16xf32>
    %24 = math.exp %23 : vector<8x16xf32>
    %cst_14 = arith.constant dense<0.000000e+00> : vector<8xf32>
    %25 = vector.multi_reduction <add>, %24, %cst_14 [1] : vector<8x16xf32> to vector<8xf32>
    %26 = vector.shape_cast %25 : vector<8xf32> to vector<8x1xf32>
    %27 = tpu.reciprocal %26 {approx = true} : vector<8x1xf32> -> vector<8x1xf32>
    %28 = vector.broadcast %27 : vector<8x1xf32> to vector<8x16xf32>
    %29 = arith.mulf %24, %28 : vector<8x16xf32>
    %30 = arith.truncf %29 : vector<8x16xf32> to vector<8x16xbf16>
    %cst_15 = arith.constant dense<0.000000e+00> : vector<8x8xf32>
    %31 = tpu.matmul %30, %17, %cst_15 {dimension_numbers = #tpu.dot_dimension_numbers<[1], [0], [0], [1], [0, 0, 1, 1], [], []>} : vector<8x16xbf16>, vector<16x8xbf16>, vector<8x8xf32> -> vector<8x8xf32>
    %32 = arith.truncf %31 : vector<8x8xf32> to vector<8x8xbf16>
    %33 = vector.extract_strided_slice %7 {offsets = [0, 8], sizes = [8, 8], strides = [1, 1]} : vector<8x32xf32> to vector<8x8xf32>
    %34 = arith.truncf %33 : vector<8x8xf32> to vector<8x8xbf16>
    %35 = vector.extract_strided_slice %12 {offsets = [0, 8], sizes = [16, 8], strides = [1, 1]} : vector<16x32xbf16> to vector<16x8xbf16>
    %36 = vector.extract_strided_slice %13 {offsets = [0, 8], sizes = [16, 8], strides = [1, 1]} : vector<16x32xbf16> to vector<16x8xbf16>
    %cst_16 = arith.constant dense<0.000000e+00> : vector<8x16xf32>
    %37 = tpu.matmul %34, %35, %cst_16 {dimension_numbers = #tpu.dot_dimension_numbers<[1], [1], [0], [0], [0, 0, 1, 0], [], []>} : vector<8x8xbf16>, vector<16x8xbf16>, vector<8x16xf32> -> vector<8x16xf32>
    %38 = arith.addf %37, %11 : vector<8x16xf32>
    %cst_17 = arith.constant dense<0xFF800000> : vector<8xf32>
    %39 = vector.multi_reduction <maximumf>, %38, %cst_17 [1] : vector<8x16xf32> to vector<8xf32>
    %40 = vector.shape_cast %39 : vector<8xf32> to vector<8x1xf32>
    %41 = vector.broadcast %40 : vector<8x1xf32> to vector<8x16xf32>
    %42 = arith.subf %38, %41 : vector<8x16xf32>
    %43 = math.exp %42 : vector<8x16xf32>
    %cst_18 = arith.constant dense<0.000000e+00> : vector<8xf32>
    %44 = vector.multi_reduction <add>, %43, %cst_18 [1] : vector<8x16xf32> to vector<8xf32>
    %45 = vector.shape_cast %44 : vector<8xf32> to vector<8x1xf32>
    %46 = tpu.reciprocal %45 {approx = true} : vector<8x1xf32> -> vector<8x1xf32>
    %47 = vector.broadcast %46 : vector<8x1xf32> to vector<8x16xf32>
    %48 = arith.mulf %43, %47 : vector<8x16xf32>
    %49 = arith.truncf %48 : vector<8x16xf32> to vector<8x16xbf16>
    %cst_19 = arith.constant dense<0.000000e+00> : vector<8x8xf32>
    %50 = tpu.matmul %49, %36, %cst_19 {dimension_numbers = #tpu.dot_dimension_numbers<[1], [0], [0], [1], [0, 0, 1, 1], [], []>} : vector<8x16xbf16>, vector<16x8xbf16>, vector<8x8xf32> -> vector<8x8xf32>
    %51 = arith.truncf %50 : vector<8x8xf32> to vector<8x8xbf16>
    %52 = vector.extract_strided_slice %7 {offsets = [0, 16], sizes = [8, 8], strides = [1, 1]} : vector<8x32xf32> to vector<8x8xf32>
    %53 = arith.truncf %52 : vector<8x8xf32> to vector<8x8xbf16>
    %54 = vector.extract_strided_slice %12 {offsets = [0, 16], sizes = [16, 8], strides = [1, 1]} : vector<16x32xbf16> to vector<16x8xbf16>
    %55 = vector.extract_strided_slice %13 {offsets = [0, 16], sizes = [16, 8], strides = [1, 1]} : vector<16x32xbf16> to vector<16x8xbf16>
    %cst_20 = arith.constant dense<0.000000e+00> : vector<8x16xf32>
    %56 = tpu.matmul %53, %54, %cst_20 {dimension_numbers = #tpu.dot_dimension_numbers<[1], [1], [0], [0], [0, 0, 1, 0], [], []>} : vector<8x8xbf16>, vector<16x8xbf16>, vector<8x16xf32> -> vector<8x16xf32>
    %57 = arith.addf %56, %11 : vector<8x16xf32>
    %cst_21 = arith.constant dense<0xFF800000> : vector<8xf32>
    %58 = vector.multi_reduction <maximumf>, %57, %cst_21 [1] : vector<8x16xf32> to vector<8xf32>
    %59 = vector.shape_cast %58 : vector<8xf32> to vector<8x1xf32>
    %60 = vector.broadcast %59 : vector<8x1xf32> to vector<8x16xf32>
    %61 = arith.subf %57, %60 : vector<8x16xf32>
    %62 = math.exp %61 : vector<8x16xf32>
    %cst_22 = arith.constant dense<0.000000e+00> : vector<8xf32>
    %63 = vector.multi_reduction <add>, %62, %cst_22 [1] : vector<8x16xf32> to vector<8xf32>
    %64 = vector.shape_cast %63 : vector<8xf32> to vector<8x1xf32>
    %65 = tpu.reciprocal %64 {approx = true} : vector<8x1xf32> -> vector<8x1xf32>
    %66 = vector.broadcast %65 : vector<8x1xf32> to vector<8x16xf32>
    %67 = arith.mulf %62, %66 : vector<8x16xf32>
    %68 = arith.truncf %67 : vector<8x16xf32> to vector<8x16xbf16>
    %cst_23 = arith.constant dense<0.000000e+00> : vector<8x8xf32>
    %69 = tpu.matmul %68, %55, %cst_23 {dimension_numbers = #tpu.dot_dimension_numbers<[1], [0], [0], [1], [0, 0, 1, 1], [], []>} : vector<8x16xbf16>, vector<16x8xbf16>, vector<8x8xf32> -> vector<8x8xf32>
    %70 = arith.truncf %69 : vector<8x8xf32> to vector<8x8xbf16>
    %71 = vector.extract_strided_slice %7 {offsets = [0, 24], sizes = [8, 8], strides = [1, 1]} : vector<8x32xf32> to vector<8x8xf32>
    %72 = arith.truncf %71 : vector<8x8xf32> to vector<8x8xbf16>
    %73 = vector.extract_strided_slice %12 {offsets = [0, 24], sizes = [16, 8], strides = [1, 1]} : vector<16x32xbf16> to vector<16x8xbf16>
    %74 = vector.extract_strided_slice %13 {offsets = [0, 24], sizes = [16, 8], strides = [1, 1]} : vector<16x32xbf16> to vector<16x8xbf16>
    %cst_24 = arith.constant dense<0.000000e+00> : vector<8x16xf32>
    %75 = tpu.matmul %72, %73, %cst_24 {dimension_numbers = #tpu.dot_dimension_numbers<[1], [1], [0], [0], [0, 0, 1, 0], [], []>} : vector<8x8xbf16>, vector<16x8xbf16>, vector<8x16xf32> -> vector<8x16xf32>
    %76 = arith.addf %75, %11 : vector<8x16xf32>
    %cst_25 = arith.constant dense<0xFF800000> : vector<8xf32>
    %77 = vector.multi_reduction <maximumf>, %76, %cst_25 [1] : vector<8x16xf32> to vector<8xf32>
    %78 = vector.shape_cast %77 : vector<8xf32> to vector<8x1xf32>
    %79 = vector.broadcast %78 : vector<8x1xf32> to vector<8x16xf32>
    %80 = arith.subf %76, %79 : vector<8x16xf32>
    %81 = math.exp %80 : vector<8x16xf32>
    %cst_26 = arith.constant dense<0.000000e+00> : vector<8xf32>
    %82 = vector.multi_reduction <add>, %81, %cst_26 [1] : vector<8x16xf32> to vector<8xf32>
    %83 = vector.shape_cast %82 : vector<8xf32> to vector<8x1xf32>
    %84 = tpu.reciprocal %83 {approx = true} : vector<8x1xf32> -> vector<8x1xf32>
    %85 = vector.broadcast %84 : vector<8x1xf32> to vector<8x16xf32>
    %86 = arith.mulf %81, %85 : vector<8x16xf32>
    %87 = arith.truncf %86 : vector<8x16xf32> to vector<8x16xbf16>
    %cst_27 = arith.constant dense<0.000000e+00> : vector<8x8xf32>
    %88 = tpu.matmul %87, %74, %cst_27 {dimension_numbers = #tpu.dot_dimension_numbers<[1], [0], [0], [1], [0, 0, 1, 1], [], []>} : vector<8x16xbf16>, vector<16x8xbf16>, vector<8x8xf32> -> vector<8x8xf32>
    %89 = arith.truncf %88 : vector<8x8xf32> to vector<8x8xbf16>
    %90 = tpu.concatenate %32, %51, %70, %89 in 1 : vector<8x8xbf16>, vector<8x8xbf16>, vector<8x8xbf16>, vector<8x8xbf16> -> vector<8x32xbf16>
    %c0_28 = arith.constant 0 : index
    %c0_29 = arith.constant 0 : index
    %91 = vector.load %arg8[%c0_28, %c0_29] : memref<32x32xbf16, #tpu.memory_space<vmem>>, vector<32x32xbf16>
    %cst_30 = arith.constant dense<0.000000e+00> : vector<8x32xf32>
    %92 = tpu.matmul %90, %91, %cst_30 {dimension_numbers = #tpu.dot_dimension_numbers<[1], [0], [0], [1], [0, 0, 1, 1], [], []>} : vector<8x32xbf16>, vector<32x32xbf16>, vector<8x32xf32> -> vector<8x32xf32>
    %93 = arith.addf %4, %92 : vector<8x32xf32>
    %cst_31 = arith.constant dense<0.000000e+00> : vector<8xf32>
    %94 = vector.multi_reduction <add>, %93, %cst_31 [1] : vector<8x32xf32> to vector<8xf32>
    %95 = vector.shape_cast %94 : vector<8xf32> to vector<8x1xf32>
    %cst_32 = arith.constant 3.200000e+01 : f32
    %96 = vector.broadcast %cst_32 : f32 to vector<8x1xf32>
    %97 = arith.divf %95, %96 : vector<8x1xf32>
    %98 = vector.broadcast %97 : vector<8x1xf32> to vector<8x32xf32>
    %99 = arith.subf %93, %98 : vector<8x32xf32>
    %100 = arith.mulf %99, %99 : vector<8x32xf32>
    %cst_33 = arith.constant dense<0.000000e+00> : vector<8xf32>
    %101 = vector.multi_reduction <add>, %100, %cst_33 [1] : vector<8x32xf32> to vector<8xf32>
    %102 = vector.shape_cast %101 : vector<8xf32> to vector<8x1xf32>
    %cst_34 = arith.constant 3.200000e+01 : f32
    %103 = vector.broadcast %cst_34 : f32 to vector<8x1xf32>
    %104 = arith.divf %102, %103 : vector<8x1xf32>
    %105 = vector.broadcast %97 : vector<8x1xf32> to vector<8x32xf32>
    %106 = arith.subf %93, %105 : vector<8x32xf32>
    %cst_35 = arith.constant 9.99999974E-6 : f32
    %107 = vector.broadcast %cst_35 : f32 to vector<8x1xf32>
    %108 = arith.addf %104, %107 : vector<8x1xf32>
    %109 = math.rsqrt %108 : vector<8x1xf32>
    %110 = vector.broadcast %109 : vector<8x1xf32> to vector<8x32xf32>
    %111 = arith.mulf %106, %110 : vector<8x32xf32>
    %c0_36 = arith.constant 0 : index
    %c0_37 = arith.constant 0 : index
    %112 = vector.load %arg9[%c0_36, %c0_37] : memref<1x32xf32, #tpu.memory_space<vmem>>, vector<1x32xf32>
    %113 = vector.broadcast %112 : vector<1x32xf32> to vector<8x32xf32>
    %114 = arith.mulf %111, %113 : vector<8x32xf32>
    %c0_38 = arith.constant 0 : index
    %c0_39 = arith.constant 0 : index
    %115 = vector.load %arg10[%c0_38, %c0_39] : memref<1x32xf32, #tpu.memory_space<vmem>>, vector<1x32xf32>
    %116 = vector.broadcast %115 : vector<1x32xf32> to vector<8x32xf32>
    %117 = arith.addf %114, %116 : vector<8x32xf32>
    %118 = arith.truncf %117 : vector<8x32xf32> to vector<8x32xbf16>
    %c0_40 = arith.constant 0 : index
    %c0_41 = arith.constant 0 : index
    %119 = vector.load %arg11[%c0_40, %c0_41] : memref<32x64xbf16, #tpu.memory_space<vmem>>, vector<32x64xbf16>
    %cst_42 = arith.constant dense<0.000000e+00> : vector<8x64xf32>
    %120 = tpu.matmul %118, %119, %cst_42 {dimension_numbers = #tpu.dot_dimension_numbers<[1], [0], [0], [1], [0, 0, 1, 1], [], []>} : vector<8x32xbf16>, vector<32x64xbf16>, vector<8x64xf32> -> vector<8x64xf32>
    %c0_43 = arith.constant 0 : index
    %c0_44 = arith.constant 0 : index
    %121 = vector.load %arg12[%c0_43, %c0_44] : memref<1x64xf32, #tpu.memory_space<vmem>>, vector<1x64xf32>
    %122 = vector.broadcast %121 : vector<1x64xf32> to vector<8x64xf32>
    %123 = arith.addf %120, %122 : vector<8x64xf32>
    %cst_45 = arith.constant 0.000000e+00 : f32
    %124 = vector.broadcast %cst_45 : f32 to vector<8x64xf32>
    %125 = arith.maximumf %123, %124 : vector<8x64xf32>
    %126 = arith.truncf %125 : vector<8x64xf32> to vector<8x64xbf16>
    %c0_46 = arith.constant 0 : index
    %c0_47 = arith.constant 0 : index
    %127 = vector.load %arg13[%c0_46, %c0_47] : memref<64x32xbf16, #tpu.memory_space<vmem>>, vector<64x32xbf16>
    %cst_48 = arith.constant dense<0.000000e+00> : vector<8x32xf32>
    %128 = tpu.matmul %126, %127, %cst_48 {dimension_numbers = #tpu.dot_dimension_numbers<[1], [0], [0], [1], [0, 0, 1, 1], [], []>} : vector<8x64xbf16>, vector<64x32xbf16>, vector<8x32xf32> -> vector<8x32xf32>
    %c0_49 = arith.constant 0 : index
    %c0_50 = arith.constant 0 : index
    %129 = vector.load %arg14[%c0_49, %c0_50] : memref<1x32xf32, #tpu.memory_space<vmem>>, vector<1x32xf32>
    %130 = vector.broadcast %129 : vector<1x32xf32> to vector<8x32xf32>
    %131 = arith.addf %128, %130 : vector<8x32xf32>
    %132 = arith.addf %117, %131 : vector<8x32xf32>
    %cst_51 = arith.constant dense<0.000000e+00> : vector<8xf32>
    %133 = vector.multi_reduction <add>, %132, %cst_51 [1] : vector<8x32xf32> to vector<8xf32>
    %134 = vector.shape_cast %133 : vector<8xf32> to vector<8x1xf32>
    %cst_52 = arith.constant 3.200000e+01 : f32
    %135 = vector.broadcast %cst_52 : f32 to vector<8x1xf32>
    %136 = arith.divf %134, %135 : vector<8x1xf32>
    %137 = vector.broadcast %136 : vector<8x1xf32> to vector<8x32xf32>
    %138 = arith.subf %132, %137 : vector<8x32xf32>
    %139 = arith.mulf %138, %138 : vector<8x32xf32>
    %cst_53 = arith.constant dense<0.000000e+00> : vector<8xf32>
    %140 = vector.multi_reduction <add>, %139, %cst_53 [1] : vector<8x32xf32> to vector<8xf32>
    %141 = vector.shape_cast %140 : vector<8xf32> to vector<8x1xf32>
    %cst_54 = arith.constant 3.200000e+01 : f32
    %142 = vector.broadcast %cst_54 : f32 to vector<8x1xf32>
    %143 = arith.divf %141, %142 : vector<8x1xf32>
    %144 = vector.broadcast %136 : vector<8x1xf32> to vector<8x32xf32>
    %145 = arith.subf %132, %144 : vector<8x32xf32>
    %cst_55 = arith.constant 9.99999974E-6 : f32
    %146 = vector.broadcast %cst_55 : f32 to vector<8x1xf32>
    %147 = arith.addf %143, %146 : vector<8x1xf32>
    %148 = math.rsqrt %147 : vector<8x1xf32>
    %149 = vector.broadcast %148 : vector<8x1xf32> to vector<8x32xf32>
    %150 = arith.mulf %145, %149 : vector<8x32xf32>
    %c0_56 = arith.constant 0 : index
    %c0_57 = arith.constant 0 : index
    %151 = vector.load %arg15[%c0_56, %c0_57] : memref<1x32xf32, #tpu.memory_space<vmem>>, vector<1x32xf32>
    %152 = vector.broadcast %151 : vector<1x32xf32> to vector<8x32xf32>
    %153 = arith.mulf %150, %152 : vector<8x32xf32>
    %c0_58 = arith.constant 0 : index
    %c0_59 = arith.constant 0 : index
    %154 = vector.load %arg16[%c0_58, %c0_59] : memref<1x32xf32, #tpu.memory_space<vmem>>, vector<1x32xf32>
    %155 = vector.broadcast %154 : vector<1x32xf32> to vector<8x32xf32>
    %156 = arith.addf %153, %155 : vector<8x32xf32>
    %c0_60 = arith.constant 0 : index
    %c0_61 = arith.constant 0 : index
    %c0_62 = arith.constant 0 : index
    %157 = vector.load %arg17[%c0_60, %c0_61, %c0_62] : memref<1x8x32xf32, #tpu.memory_space<vmem>>, vector<1x8x32xf32>
    %158 = vector.shape_cast %157 : vector<1x8x32xf32> to vector<8x32xf32>
    %159 = vector.shape_cast %156 : vector<8x32xf32> to vector<1x8x32xf32>
    tpu.vector_store %arg17[%c0_60, %c0_61, %c0_62], %159 {strides = array<i32>} : memref<1x8x32xf32, #tpu.memory_space<vmem>>, vector<1x8x32xf32>,
    return
  }
  func.func @transform_0(%arg0: i32, %arg1: i32) -> (i32, i32, i32) {
    %c0_i32 = arith.constant 0 : i32
    %c0_i32_0 = arith.constant 0 : i32
    return %arg0, %arg1, %c0_i32 : i32, i32, i32
  }
  func.func @transform_1(%arg0: i32, %arg1: i32) -> (i32, i32, i32) {
    %c0_i32 = arith.constant 0 : i32
    %c0_i32_0 = arith.constant 0 : i32
    %c0_i32_1 = arith.constant 0 : i32
    return %arg0, %c0_i32, %c0_i32_0 : i32, i32, i32
  }
  func.func @transform_2(%arg0: i32, %arg1: i32) -> (i32, i32, i32) {
    %c0_i32 = arith.constant 0 : i32
    %c0_i32_0 = arith.constant 0 : i32
    %c0_i32_1 = arith.constant 0 : i32
    return %arg0, %c0_i32, %c0_i32_0 : i32, i32, i32
  }
  func.func @transform_3(%arg0: i32, %arg1: i32) -> (i32, i32) {
    %c0_i32 = arith.constant 0 : i32
    %c0_i32_0 = arith.constant 0 : i32
    %c0_i32_1 = arith.constant 0 : i32
    return %c0_i32, %c0_i32_0 : i32, i32
  }
  func.func @transform_4(%arg0: i32, %arg1: i32) -> (i32, i32) {
    %c0_i32 = arith.constant 0 : i32
    %c0_i32_0 = arith.constant 0 : i32
    %c0_i32_1 = arith.constant 0 : i32
    return %c0_i32, %c0_i32_0 : i32, i32
  }
  func.func @transform_5(%arg0: i32, %arg1: i32) -> (i32, i32) {
    %c0_i32 = arith.constant 0 : i32
    %c0_i32_0 = arith.constant 0 : i32
    %c0_i32_1 = arith.constant 0 : i32
    return %c0_i32, %c0_i32_0 : i32, i32
  }
  func.func @transform_6(%arg0: i32, %arg1: i32) -> (i32, i32) {
    %c0_i32 = arith.constant 0 : i32
    %c0_i32_0 = arith.constant 0 : i32
    %c0_i32_1 = arith.constant 0 : i32
    return %c0_i32, %c0_i32_0 : i32, i32
  }
  func.func @transform_7(%arg0: i32, %arg1: i32) -> (i32, i32) {
    %c0_i32 = arith.constant 0 : i32
    %c0_i32_0 = arith.constant 0 : i32
    %c0_i32_1 = arith.constant 0 : i32
    return %c0_i32, %c0_i32_0 : i32, i32
  }
  func.func @transform_8(%arg0: i32, %arg1: i32) -> (i32, i32) {
    %c0_i32 = arith.constant 0 : i32
    %c0_i32_0 = arith.constant 0 : i32
    %c0_i32_1 = arith.constant 0 : i32
    return %c0_i32, %c0_i32_0 : i32, i32
  }
  func.func @transform_9(%arg0: i32, %arg1: i32) -> (i32, i32) {
    %c0_i32 = arith.constant 0 : i32
    %c0_i32_0 = arith.constant 0 : i32
    %c0_i32_1 = arith.constant 0 : i32
    return %c0_i32, %c0_i32_0 : i32, i32
  }
  func.func @transform_10(%arg0: i32, %arg1: i32) -> (i32, i32) {
    %c0_i32 = arith.constant 0 : i32
    %c0_i32_0 = arith.constant 0 : i32
    %c0_i32_1 = arith.constant 0 : i32
    return %c0_i32, %c0_i32_0 : i32, i32
  }
  func.func @transform_11(%arg0: i32, %arg1: i32) -> (i32, i32) {
    %c0_i32 = arith.constant 0 : i32
    %c0_i32_0 = arith.constant 0 : i32
    %c0_i32_1 = arith.constant 0 : i32
    return %c0_i32, %c0_i32_0 : i32, i32
  }
  func.func @transform_12(%arg0: i32, %arg1: i32) -> (i32, i32) {
    %c0_i32 = arith.constant 0 : i32
    %c0_i32_0 = arith.constant 0 : i32
    %c0_i32_1 = arith.constant 0 : i32
    return %c0_i32, %c0_i32_0 : i32, i32
  }
  func.func @transform_13(%arg0: i32, %arg1: i32) -> (i32, i32) {
    %c0_i32 = arith.constant 0 : i32
    %c0_i32_0 = arith.constant 0 : i32
    %c0_i32_1 = arith.constant 0 : i32
    return %c0_i32, %c0_i32_0 : i32, i32
  }
  func.func @transform_14(%arg0: i32, %arg1: i32) -> (i32, i32) {
    %c0_i32 = arith.constant 0 : i32
    %c0_i32_0 = arith.constant 0 : i32
    %c0_i32_1 = arith.constant 0 : i32
    return %c0_i32, %c0_i32_0 : i32, i32
  }
  func.func @transform_15(%arg0: i32, %arg1: i32) -> (i32, i32, i32) {
    %c0_i32 = arith.constant 0 : i32
    %c0_i32_0 = arith.constant 0 : i32
    return %arg0, %arg1, %c0_i32 : i32, i32, i32
  }
}

</mosaic_0001>

<llo_original>
// kernel: tpu_custom_call.1
$region0: #{tpu_custom_call.1}
  #allocation0 [shape = 'u32[]', space=smem, size = 0x4, offset = 0x4, fixed_abs, tag = 'smem constant byte address 0x4 - core index']
  #allocation1 [shape = 'u32[144,128]{1,0:T(1,128)}', space=vmem, size = 0x12000, scoped, tag = 'internal scratch']
  #allocation2 [shape = 'bf16[16,32]{1,0:T(8,128)(2,1)}', space=vmem, size = 0x1000, scoped, tag = 'scratch operand']
  #allocation3 [shape = 'bf16[16,32]{1,0:T(8,128)(2,1)}', space=vmem, size = 0x1000, scoped, tag = 'scratch operand']
  %s0 = inlined_call_operand.vmem [shape: f32[2,16,32], index: 0, kind: input, shape index: {}]
  %s1 = inlined_call_operand.vmem [shape: bf16[2,16,32], index: 1, kind: input, shape index: {}]
  %s2 = inlined_call_operand.hbm [shape: f32[2,1,16], index: 2, kind: input, shape index: {}]
  %s3 = inlined_call_operand.hbm [shape: bf16[32,32], index: 3, kind: input, shape index: {}]
  %s4 = inlined_call_operand.hbm [shape: bf16[32,32], index: 4, kind: input, shape index: {}]
  %s5 = inlined_call_operand.hbm [shape: bf16[32,32], index: 5, kind: input, shape index: {}]
  %s6 = inlined_call_operand.hbm [shape: bf16[32,32], index: 6, kind: input, shape index: {}]
  %s7 = inlined_call_operand.hbm [shape: f32[1,32], index: 7, kind: input, shape index: {}]
  %s8 = inlined_call_operand.hbm [shape: f32[1,32], index: 8, kind: input, shape index: {}]
  %s9 = inlined_call_operand.vmem [shape: bf16[32,64], index: 9, kind: input, shape index: {}]
  %s10 = inlined_call_operand.vmem [shape: f32[1,64], index: 10, kind: input, shape index: {}]
  %s11 = inlined_call_operand.vmem [shape: bf16[64,32], index: 11, kind: input, shape index: {}]
  %s12 = inlined_call_operand.vmem [shape: f32[1,32], index: 12, kind: input, shape index: {}]
  %s13 = inlined_call_operand.vmem [shape: f32[1,32], index: 13, kind: input, shape index: {}]
  %s14 = inlined_call_operand.vmem [shape: f32[1,32], index: 14, kind: input, shape index: {}]
  %s15 = inlined_call_operand.hbm [shape: f32[2,16,32], index: 15, kind: output, shape index: {}]
  %s16 = sld [smem:[#allocation0]]
  $region125: #{tpu_custom_call.1} parent=0
    _
  %s18 = ssub.s32 1, %s16
  %s19 = scalar_select 0, %s18, %s16
  $region1: #{tpu_custom_call.1} parent=0
    #allocation4 [shape = 'u8[1024]{0}', space=vmem, size = 0x400, scoped, tag = 'input window, operand 2']
    #allocation5 [shape = 's32[2]{0}', space=sflag, size = 0x8, scoped, tag = 'scoped memory for tpu_custom_call.1']
    #allocation6 [shape = 's32[2]{0}', space=sflag, size = 0x8, scoped, tag = 'scoped memory for tpu_custom_call.1']
    #allocation7 [shape = 'u8[8192]{0}', space=vmem, size = 0x2000, scoped, tag = 'input window, operand 3, single buffered']
    #allocation8 [shape = 's32[1]{0}', space=sflag, size = 0x4, scoped, tag = 'scoped memory for tpu_custom_call.1']
    #allocation9 [shape = 'u8[8192]{0}', space=vmem, size = 0x2000, scoped, tag = 'input window, operand 4, single buffered']
    #allocation10 [shape = 'u8[8192]{0}', space=vmem, size = 0x2000, scoped, tag = 'input window, operand 5, single buffered']
    #allocation11 [shape = 's32[1]{0}', space=sflag, size = 0x4, scoped, tag = 'scoped memory for tpu_custom_call.1']
    #allocation12 [shape = 'u8[8192]{0}', space=vmem, size = 0x2000, scoped, tag = 'input window, operand 6, single buffered']
    #allocation13 [shape = 'u8[512]{0}', space=vmem, size = 0x400, scoped, tag = 'input window, operand 7, single buffered']
    #allocation14 [shape = 's32[1]{0}', space=sflag, size = 0x4, scoped, tag = 'scoped memory for tpu_custom_call.1']
    #allocation15 [shape = 'u8[512]{0}', space=vmem, size = 0x400, scoped, tag = 'input window, operand 8, single buffered']
    #allocation16 [shape = 'u8[8192]{0}', space=vmem, size = 0x2000, scoped, tag = 'output window, operand 0']
    %20 = vsyncpa [#allocation5], 0
    %s21 = scalar_lea.sflag [#allocation5], 1
    %22 = vsyncpa %s21, 0
    %23 = vsyncpa [#allocation8], 0
    %24 = vsyncpa [#allocation11], 0
    %25 = vsyncpa [#allocation14], 0
    %26 = vsyncpa [#allocation6], 0
    %s27 = scalar_lea.sflag [#allocation6], 1
    %28 = vsyncpa %s27, 0
    loop: start=0, step=1, limit=6
    $region2: #{tpu_custom_call.1} parent=1 // loop_pre_header
      _
    $region3: #{tpu_custom_call.1} parent=1 // loop_header
      %s30 = sphi 0, %s34
      %p31 = scmp.ge.s32.totalorder %s30, 6
      %s37 = sphi 0, %s49
      %s38 = sphi 0, %s45
      %s39 = sphi 0, %s37
      %s40 = sphi 0, %s38
      %s41 = sphi 0, %s39
      %s42 = sphi 0, %s40
      %s54 = sphi 0, %s56
      %s57 = sphi 0, %s54
      %s58 = sphi 0, %s57
      %s74 = sphi 0, %s58
      %s80 = sphi 0, %s82
      %s83 = sphi 0, %s80
      %s84 = sphi 0, %s83
      %s100 = sphi 0, %s84
      %s106 = sphi 0, %s108
      %s109 = sphi 0, %s106
      %s110 = sphi 0, %s109
      %s126 = sphi 0, %s110
      %s130 = sphi 0, %s130
      %s132 = sphi 0, %s130
      %s133 = sphi 0, %s132
      %s147 = sphi 0, %s133
      %s151 = sphi 0, %s151
      %s153 = sphi 0, %s151
      %s154 = sphi 0, %s153
      %s168 = sphi 0, %s154
      %s172 = sphi 0, %s172
      %s174 = sphi 0, %s172
      %s175 = sphi 0, %s174
      %s189 = sphi 0, %s175
      %s193 = sphi 0, %s193
      %s195 = sphi 0, %s193
      %s196 = sphi 0, %s195
      %s210 = sphi 0, %s196
      %s214 = sphi 0, %s214
      %s216 = sphi 0, %s214
      %s217 = sphi 0, %s216
      %s231 = sphi 0, %s217
      %s235 = sphi 0, %s235
      %s237 = sphi 0, %s235
      %s238 = sphi 0, %s237
      %s252 = sphi 0, %s238
      %s256 = sphi 0, %s256
      %s258 = sphi 0, %s256
      %s259 = sphi 0, %s258
      %s273 = sphi 0, %s259
      %s277 = sphi 0, %s277
      %s279 = sphi 0, %s277
      %s280 = sphi 0, %s279
      %s294 = sphi 0, %s280
      %s298 = sphi 0, %s298
      %s300 = sphi 0, %s298
      %s301 = sphi 0, %s300
      %s315 = sphi 0, %s301
      %s319 = sphi 0, %s319
      %s321 = sphi 0, %s319
      %s322 = sphi 0, %s321
      %s336 = sphi 0, %s322
      %s340 = sphi 0, %s340
      %s342 = sphi 0, %s340
      %s343 = sphi 0, %s342
      %s357 = sphi 0, %s343
      %s361 = sphi 0, %s361
      %s363 = sphi 0, %s361
      %s364 = sphi 0, %s363
      %s378 = sphi 0, %s364
      %s386 = sphi 0, %s388
      %s389 = sphi 0, %s386
      %s390 = sphi 0, %s389
      %s406 = sphi 0, %s390
    $region4: #{tpu_custom_call.1} parent=1 // loop_header_branch
      %33 = sbr.rel (%p31) target = $region8
    $region5: #{tpu_custom_call.1} parent=1 // loop_body
      %s35 = ssub.s32 %s30, 1
      %s36 = ssub.s32 %s30, 2
      %s43 = sadd.s32 1, %s38
      %p44 = scmp.ge.s32.totalorder %s43, 2
      %s45 = scalar_select %p44, 0, %s43
      %s46 = sadd.s32 1, %s37
      %s47 = scalar_select %p44, %s46, %s37
      %p48 = scmp.ge.s32.totalorder %s47, 2
      %s49 = scalar_select %p48, 0, %s47
      %s50 = ssub.s32 %s37, %s49
      %s51 = ssub.s32 %s38, %s45
      %s52 = sor.u32 %s50, %s51
      %p53 = scmp.eq.s32.totalorder %s52, 0
      %s55 = sadd.s32 %s54, 1
      %s56 = scalar_select %p53, %s54, %s55
      %p59 = pneg %p53
      %p60 = scmp.eq.s32.totalorder %s30, 3
      %p61 = por %p59, %p60
      %p62 = scmp.ne.s32.totalorder %s54, %s57
      %p63 = scmp.eq.s32.totalorder %s30, 0
      %p64 = por %p62, %p63
      %p65 = scmp.ne.s32.totalorder %s54, %s57
      %p66 = scmp.eq.s32.totalorder %s35, 3
      %p67 = por %p65, %p66
      %p68 = scmp.ne.s32.totalorder %s57, %s58
      %p69 = scmp.eq.s32.totalorder %s35, 0
      %p70 = por %p68, %p69
      %p71 = scmp.ne.s32.totalorder %s57, %s58
      %p72 = scmp.eq.s32.totalorder %s36, 3
      %p73 = por %p71, %p72
      %p75 = scmp.ne.s32.totalorder %s58, %s74
      %p76 = scmp.eq.s32.totalorder %s36, 0
      %p77 = por %p75, %p76
      %s78 = ssub.s32 %s37, %s49
      %p79 = scmp.eq.s32.totalorder %s78, 0
      %s81 = sadd.s32 %s80, 1
      %s82 = scalar_select %p79, %s80, %s81
      %p85 = pneg %p79
      %p86 = scmp.eq.s32.totalorder %s30, 3
      %p87 = por %p85, %p86
      %p88 = scmp.ne.s32.totalorder %s80, %s83
      %p89 = scmp.eq.s32.totalorder %s30, 0
      %p90 = por %p88, %p89
      %p91 = scmp.ne.s32.totalorder %s80, %s83
      %p92 = scmp.eq.s32.totalorder %s35, 3
      %p93 = por %p91, %p92
      %p94 = scmp.ne.s32.totalorder %s83, %s84
      %p95 = scmp.eq.s32.totalorder %s35, 0
      %p96 = por %p94, %p95
      %p97 = scmp.ne.s32.totalorder %s83, %s84
      %p98 = scmp.eq.s32.totalorder %s36, 3
      %p99 = por %p97, %p98
      %p101 = scmp.ne.s32.totalorder %s84, %s100
      %p102 = scmp.eq.s32.totalorder %s36, 0
      %p103 = por %p101, %p102
      %s104 = ssub.s32 %s37, %s49
      %p105 = scmp.eq.s32.totalorder %s104, 0
      %s107 = sadd.s32 %s106, 1
      %s108 = scalar_select %p105, %s106, %s107
      %p111 = pneg %p105
      %p112 = scmp.eq.s32.totalorder %s30, 3
      %p113 = por %p111, %p112
      %p114 = scmp.ne.s32.totalorder %s106, %s109
      %p115 = scmp.eq.s32.totalorder %s30, 0
      %p116 = por %p114, %p115
      %p117 = scmp.ne.s32.totalorder %s106, %s109
      %p118 = scmp.eq.s32.totalorder %s35, 3
      %p119 = por %p117, %p118
      %p120 = scmp.ne.s32.totalorder %s109, %s110
      %p121 = scmp.eq.s32.totalorder %s35, 0
      %p122 = por %p120, %p121
      %p123 = scmp.ne.s32.totalorder %s109, %s110
      %p124 = scmp.eq.s32.totalorder %s36, 3
      %p125 = por %p123, %p124
      %p127 = scmp.ne.s32.totalorder %s110, %s126
      %p128 = scmp.eq.s32.totalorder %s36, 0
      %p129 = por %p127, %p128
      %s131 = sadd.s32 %s130, 1
      %p134 = scmp.eq.s32.totalorder %s30, 3
      %p135 = scmp.ne.s32.totalorder %s130, %s132
      %p136 = scmp.eq.s32.totalorder %s30, 0
      %p137 = por %p135, %p136
      %p138 = scmp.ne.s32.totalorder %s130, %s132
      %p139 = scmp.eq.s32.totalorder %s35, 3
      %p140 = por %p138, %p139
      %p141 = scmp.ne.s32.totalorder %s132, %s133
      %p142 = scmp.eq.s32.totalorder %s35, 0
      %p143 = por %p141, %p142
      %p144 = scmp.ne.s32.totalorder %s132, %s133
      %p145 = scmp.eq.s32.totalorder %s36, 3
      %p146 = por %p144, %p145
      %p148 = scmp.ne.s32.totalorder %s133, %s147
      %p149 = scmp.eq.s32.totalorder %s36, 0
      %p150 = por %p148, %p149
      %s152 = sadd.s32 %s151, 1
      %p155 = scmp.eq.s32.totalorder %s30, 3
      %p156 = scmp.ne.s32.totalorder %s151, %s153
      %p157 = scmp.eq.s32.totalorder %s30, 0
      %p158 = por %p156, %p157
      %p159 = scmp.ne.s32.totalorder %s151, %s153
      %p160 = scmp.eq.s32.totalorder %s35, 3
      %p161 = por %p159, %p160
      %p162 = scmp.ne.s32.totalorder %s153, %s154
      %p163 = scmp.eq.s32.totalorder %s35, 0
      %p164 = por %p162, %p163
      %p165 = scmp.ne.s32.totalorder %s153, %s154
      %p166 = scmp.eq.s32.totalorder %s36, 3
      %p167 = por %p165, %p166
      %p169 = scmp.ne.s32.totalorder %s154, %s168
      %p170 = scmp.eq.s32.totalorder %s36, 0
      %p171 = por %p169, %p170
      %s173 = sadd.s32 %s172, 1
      %p176 = scmp.eq.s32.totalorder %s30, 3
      %p177 = scmp.ne.s32.totalorder %s172, %s174
      %p178 = scmp.eq.s32.totalorder %s30, 0
      %p179 = por %p177, %p178
      %p180 = scmp.ne.s32.totalorder %s172, %s174
      %p181 = scmp.eq.s32.totalorder %s35, 3
      %p182 = por %p180, %p181
      %p183 = scmp.ne.s32.totalorder %s174, %s175
      %p184 = scmp.eq.s32.totalorder %s35, 0
      %p185 = por %p183, %p184
      %p186 = scmp.ne.s32.totalorder %s174, %s175
      %p187 = scmp.eq.s32.totalorder %s36, 3
      %p188 = por %p186, %p187
      %p190 = scmp.ne.s32.totalorder %s175, %s189
      %p191 = scmp.eq.s32.totalorder %s36, 0
      %p192 = por %p190, %p191
      %s194 = sadd.s32 %s193, 1
      %p197 = scmp.eq.s32.totalorder %s30, 3
      %p198 = scmp.ne.s32.totalorder %s193, %s195
      %p199 = scmp.eq.s32.totalorder %s30, 0
      %p200 = por %p198, %p199
      %p201 = scmp.ne.s32.totalorder %s193, %s195
      %p202 = scmp.eq.s32.totalorder %s35, 3
      %p203 = por %p201, %p202
      %p204 = scmp.ne.s32.totalorder %s195, %s196
      %p205 = scmp.eq.s32.totalorder %s35, 0
      %p206 = por %p204, %p205
      %p207 = scmp.ne.s32.totalorder %s195, %s196
      %p208 = scmp.eq.s32.totalorder %s36, 3
      %p209 = por %p207, %p208
      %p211 = scmp.ne.s32.totalorder %s196, %s210
      %p212 = scmp.eq.s32.totalorder %s36, 0
      %p213 = por %p211, %p212
      %s215 = sadd.s32 %s214, 1
      %p218 = scmp.eq.s32.totalorder %s30, 3
      %p219 = scmp.ne.s32.totalorder %s214, %s216
      %p220 = scmp.eq.s32.totalorder %s30, 0
      %p221 = por %p219, %p220
      %p222 = scmp.ne.s32.totalorder %s214, %s216
      %p223 = scmp.eq.s32.totalorder %s35, 3
      %p224 = por %p222, %p223
      %p225 = scmp.ne.s32.totalorder %s216, %s217
      %p226 = scmp.eq.s32.totalorder %s35, 0
      %p227 = por %p225, %p226
      %p228 = scmp.ne.s32.totalorder %s216, %s217
      %p229 = scmp.eq.s32.totalorder %s36, 3
      %p230 = por %p228, %p229
      %p232 = scmp.ne.s32.totalorder %s217, %s231
      %p233 = scmp.eq.s32.totalorder %s36, 0
      %p234 = por %p232, %p233
      %s236 = sadd.s32 %s235, 1
      %p239 = scmp.eq.s32.totalorder %s30, 3
      %p240 = scmp.ne.s32.totalorder %s235, %s237
      %p241 = scmp.eq.s32.totalorder %s30, 0
      %p242 = por %p240, %p241
      %p243 = scmp.ne.s32.totalorder %s235, %s237
      %p244 = scmp.eq.s32.totalorder %s35, 3
      %p245 = por %p243, %p244
      %p246 = scmp.ne.s32.totalorder %s237, %s238
      %p247 = scmp.eq.s32.totalorder %s35, 0
      %p248 = por %p246, %p247
      %p249 = scmp.ne.s32.totalorder %s237, %s238
      %p250 = scmp.eq.s32.totalorder %s36, 3
      %p251 = por %p249, %p250
      %p253 = scmp.ne.s32.totalorder %s238, %s252
      %p254 = scmp.eq.s32.totalorder %s36, 0
      %p255 = por %p253, %p254
      %s257 = sadd.s32 %s256, 1
      %p260 = scmp.eq.s32.totalorder %s30, 3
      %p261 = scmp.ne.s32.totalorder %s256, %s258
      %p262 = scmp.eq.s32.totalorder %s30, 0
      %p263 = por %p261, %p262
      %p264 = scmp.ne.s32.totalorder %s256, %s258
      %p265 = scmp.eq.s32.totalorder %s35, 3
      %p266 = por %p264, %p265
      %p267 = scmp.ne.s32.totalorder %s258, %s259
      %p268 = scmp.eq.s32.totalorder %s35, 0
      %p269 = por %p267, %p268
      %p270 = scmp.ne.s32.totalorder %s258, %s259
      %p271 = scmp.eq.s32.totalorder %s36, 3
      %p272 = por %p270, %p271
      %p274 = scmp.ne.s32.totalorder %s259, %s273
      %p275 = scmp.eq.s32.totalorder %s36, 0
      %p276 = por %p274, %p275
      %s278 = sadd.s32 %s277, 1
      %p281 = scmp.eq.s32.totalorder %s30, 3
      %p282 = scmp.ne.s32.totalorder %s277, %s279
      %p283 = scmp.eq.s32.totalorder %s30, 0
      %p284 = por %p282, %p283
      %p285 = scmp.ne.s32.totalorder %s277, %s279
      %p286 = scmp.eq.s32.totalorder %s35, 3
      %p287 = por %p285, %p286
      %p288 = scmp.ne.s32.totalorder %s279, %s280
      %p289 = scmp.eq.s32.totalorder %s35, 0
      %p290 = por %p288, %p289
      %p291 = scmp.ne.s32.totalorder %s279, %s280
      %p292 = scmp.eq.s32.totalorder %s36, 3
      %p293 = por %p291, %p292
      %p295 = scmp.ne.s32.totalorder %s280, %s294
      %p296 = scmp.eq.s32.totalorder %s36, 0
      %p297 = por %p295, %p296
      %s299 = sadd.s32 %s298, 1
      %p302 = scmp.eq.s32.totalorder %s30, 3
      %p303 = scmp.ne.s32.totalorder %s298, %s300
      %p304 = scmp.eq.s32.totalorder %s30, 0
      %p305 = por %p303, %p304
      %p306 = scmp.ne.s32.totalorder %s298, %s300
      %p307 = scmp.eq.s32.totalorder %s35, 3
      %p308 = por %p306, %p307
      %p309 = scmp.ne.s32.totalorder %s300, %s301
      %p310 = scmp.eq.s32.totalorder %s35, 0
      %p311 = por %p309, %p310
      %p312 = scmp.ne.s32.totalorder %s300, %s301
      %p313 = scmp.eq.s32.totalorder %s36, 3
      %p314 = por %p312, %p313
      %p316 = scmp.ne.s32.totalorder %s301, %s315
      %p317 = scmp.eq.s32.totalorder %s36, 0
      %p318 = por %p316, %p317
      %s320 = sadd.s32 %s319, 1
      %p323 = scmp.eq.s32.totalorder %s30, 3
      %p324 = scmp.ne.s32.totalorder %s319, %s321
      %p325 = scmp.eq.s32.totalorder %s30, 0
      %p326 = por %p324, %p325
      %p327 = scmp.ne.s32.totalorder %s319, %s321
      %p328 = scmp.eq.s32.totalorder %s35, 3
      %p329 = por %p327, %p328
      %p330 = scmp.ne.s32.totalorder %s321, %s322
      %p331 = scmp.eq.s32.totalorder %s35, 0
      %p332 = por %p330, %p331
      %p333 = scmp.ne.s32.totalorder %s321, %s322
      %p334 = scmp.eq.s32.totalorder %s36, 3
      %p335 = por %p333, %p334
      %p337 = scmp.ne.s32.totalorder %s322, %s336
      %p338 = scmp.eq.s32.totalorder %s36, 0
      %p339 = por %p337, %p338
      %s341 = sadd.s32 %s340, 1
      %p344 = scmp.eq.s32.totalorder %s30, 3
      %p345 = scmp.ne.s32.totalorder %s340, %s342
      %p346 = scmp.eq.s32.totalorder %s30, 0
      %p347 = por %p345, %p346
      %p348 = scmp.ne.s32.totalorder %s340, %s342
      %p349 = scmp.eq.s32.totalorder %s35, 3
      %p350 = por %p348, %p349
      %p351 = scmp.ne.s32.totalorder %s342, %s343
      %p352 = scmp.eq.s32.totalorder %s35, 0
      %p353 = por %p351, %p352
      %p354 = scmp.ne.s32.totalorder %s342, %s343
      %p355 = scmp.eq.s32.totalorder %s36, 3
      %p356 = por %p354, %p355
      %p358 = scmp.ne.s32.totalorder %s343, %s357
      %p359 = scmp.eq.s32.totalorder %s36, 0
      %p360 = por %p358, %p359
      %s362 = sadd.s32 %s361, 1
      %p365 = scmp.eq.s32.totalorder %s30, 3
      %p366 = scmp.ne.s32.totalorder %s361, %s363
      %p367 = scmp.eq.s32.totalorder %s30, 0
      %p368 = por %p366, %p367
      %p369 = scmp.ne.s32.totalorder %s361, %s363
      %p370 = scmp.eq.s32.totalorder %s35, 3
      %p371 = por %p369, %p370
      %p372 = scmp.ne.s32.totalorder %s363, %s364
      %p373 = scmp.eq.s32.totalorder %s35, 0
      %p374 = por %p372, %p373
      %p375 = scmp.ne.s32.totalorder %s363, %s364
      %p376 = scmp.eq.s32.totalorder %s36, 3
      %p377 = por %p375, %p376
      %p379 = scmp.ne.s32.totalorder %s364, %s378
      %p380 = scmp.eq.s32.totalorder %s36, 0
      %p381 = por %p379, %p380
      %s382 = ssub.s32 %s37, %s49
      %s383 = ssub.s32 %s38, %s45
      %s384 = sor.u32 %s382, %s383
      %p385 = scmp.eq.s32.totalorder %s384, 0
      %s387 = sadd.s32 %s386, 1
      %s388 = scalar_select %p385, %s386, %s387
      %p391 = pneg %p385
      %p392 = scmp.eq.s32.totalorder %s30, 3
      %p393 = por %p391, %p392
      %p394 = scmp.ne.s32.totalorder %s386, %s389
      %p395 = scmp.eq.s32.totalorder %s30, 0
      %p396 = por %p394, %p395
      %p397 = scmp.ne.s32.totalorder %s386, %s389
      %p398 = scmp.eq.s32.totalorder %s35, 3
      %p399 = por %p397, %p398
      %p400 = scmp.ne.s32.totalorder %s389, %s390
      %p401 = scmp.eq.s32.totalorder %s35, 0
      %p402 = por %p400, %p401
      %p403 = scmp.ne.s32.totalorder %s389, %s390
      %p404 = scmp.eq.s32.totalorder %s36, 3
      %p405 = por %p403, %p404
      %p407 = scmp.ne.s32.totalorder %s390, %s406
      %p408 = scmp.eq.s32.totalorder %s36, 0
      %p409 = por %p407, %p408
      %p410 = scmp.le.s32.totalorder 1, %s30
      %p411 = scmp.lt.s32.totalorder %s30, 5
      %p412 = pnand %p410, %p411
      %p413 = pneg %p412
      // Predicated region
      $region9: #{tpu_custom_call.1} parent=5 // pred_check
        _
      $region10: #{tpu_custom_call.1} parent=5 // pred_check_branch
        %415 = sbr.rel (%p412) target = $region12
      $region11: #{tpu_custom_call.1} parent=5 // pred_region
        %s416 = ssub.s32 %s30, 1
        // Predicated region
        $region13: #{tpu_custom_call.1} parent=11 // pred_check
          %p417 = pneg %p143
        $region14: #{tpu_custom_call.1} parent=11 // pred_check_branch
          %419 = sbr.rel (%p417) target = $region16
        $region15: #{tpu_custom_call.1} parent=11 // pred_region
          %s421 = ssub.s32 256, 256
          %422 = vsyncadd [#allocation8], %s421
          %s423 = sshll.u32 [#allocation7], 4
          %s424 = int_to_ptr.vmem [resolvable:$true] %s423
          %429 = dma.hbm_to_vmem [thread:$0]  %s3, 256, %s424, [#allocation8], 64, 64, 4
        $region16: #{tpu_custom_call.1} parent=11 // pred_fallthru
          _
        // Predicated region
        $region17: #{tpu_custom_call.1} parent=11 // pred_check
          %p430 = pneg %p164
        $region18: #{tpu_custom_call.1} parent=11 // pred_check_branch
          %432 = sbr.rel (%p430) target = $region20
        $region19: #{tpu_custom_call.1} parent=11 // pred_region
          %s434 = ssub.s32 256, 256
          %435 = vsyncadd [#allocation8], %s434
          %s436 = sshll.u32 [#allocation9], 4
          %s437 = int_to_ptr.vmem [resolvable:$true] %s436
          %442 = dma.hbm_to_vmem [thread:$0]  %s4, 256, %s437, [#allocation8], 64, 64, 4
        $region20: #{tpu_custom_call.1} parent=11 // pred_fallthru
          _
        // Predicated region
        $region21: #{tpu_custom_call.1} parent=11 // pred_check
          %p443 = pneg %p185
        $region22: #{tpu_custom_call.1} parent=11 // pred_check_branch
          %445 = sbr.rel (%p443) target = $region24
        $region23: #{tpu_custom_call.1} parent=11 // pred_region
          %s447 = ssub.s32 256, 256
          %448 = vsyncadd [#allocation11], %s447
          %s449 = sshll.u32 [#allocation10], 4
          %s450 = int_to_ptr.vmem [resolvable:$true] %s449
          %455 = dma.hbm_to_vmem [thread:$0]  %s5, 256, %s450, [#allocation11], 64, 64, 4
        $region24: #{tpu_custom_call.1} parent=11 // pred_fallthru
          _
        // Predicated region
        $region25: #{tpu_custom_call.1} parent=11 // pred_check
          %p456 = pneg %p206
        $region26: #{tpu_custom_call.1} parent=11 // pred_check_branch
          %458 = sbr.rel (%p456) target = $region28
        $region27: #{tpu_custom_call.1} parent=11 // pred_region
          %s460 = ssub.s32 256, 256
          %461 = vsyncadd [#allocation11], %s460
          %s462 = sshll.u32 [#allocation12], 4
          %s463 = int_to_ptr.vmem [resolvable:$true] %s462
          %468 = dma.hbm_to_vmem [thread:$0]  %s6, 256, %s463, [#allocation11], 64, 64, 4
        $region28: #{tpu_custom_call.1} parent=11 // pred_fallthru
          _
        // Predicated region
        $region29: #{tpu_custom_call.1} parent=11 // pred_check
          %p469 = pneg %p227
        $region30: #{tpu_custom_call.1} parent=11 // pred_check_branch
          %471 = sbr.rel (%p469) target = $region32
        $region31: #{tpu_custom_call.1} parent=11 // pred_region
          %s473 = ssub.s32 16, 16
          %474 = vsyncadd [#allocation14], %s473
          %s476 = sshll.u32 [#allocation13], 4
          %s477 = int_to_ptr.vmem [resolvable:$true] %s476
          %479 = dma.hbm_to_vmem [thread:$0]  %s7, 16, %s477, [#allocation14]
        $region32: #{tpu_custom_call.1} parent=11 // pred_fallthru
          _
        // Predicated region
        $region33: #{tpu_custom_call.1} parent=11 // pred_check
          %p480 = pneg %p248
        $region34: #{tpu_custom_call.1} parent=11 // pred_check_branch
          %482 = sbr.rel (%p480) target = $region36
        $region35: #{tpu_custom_call.1} parent=11 // pred_region
          %s484 = ssub.s32 16, 16
          %485 = vsyncadd [#allocation14], %s484
          %s487 = sshll.u32 [#allocation15], 4
          %s488 = int_to_ptr.vmem [resolvable:$true] %s487
          %490 = dma.hbm_to_vmem [thread:$0]  %s8, 16, %s488, [#allocation14]
        $region36: #{tpu_custom_call.1} parent=11 // pred_fallthru
          _
        // Predicated region
        $region37: #{tpu_custom_call.1} parent=11 // pred_check
          %p491 = pneg %p269
        $region38: #{tpu_custom_call.1} parent=11 // pred_check_branch
          %493 = sbr.rel (%p491) target = $region40
        $region39: #{tpu_custom_call.1} parent=11 // pred_region
          _
        $region40: #{tpu_custom_call.1} parent=11 // pred_fallthru
          _
        // Predicated region
        $region41: #{tpu_custom_call.1} parent=11 // pred_check
          %p494 = pneg %p290
        $region42: #{tpu_custom_call.1} parent=11 // pred_check_branch
          %496 = sbr.rel (%p494) target = $region44
        $region43: #{tpu_custom_call.1} parent=11 // pred_region
          _
        $region44: #{tpu_custom_call.1} parent=11 // pred_fallthru
          _
        // Predicated region
        $region45: #{tpu_custom_call.1} parent=11 // pred_check
          %p497 = pneg %p311
        $region46: #{tpu_custom_call.1} parent=11 // pred_check_branch
          %499 = sbr.rel (%p497) target = $region48
        $region47: #{tpu_custom_call.1} parent=11 // pred_region
          _
        $region48: #{tpu_custom_call.1} parent=11 // pred_fallthru
          _
        // Predicated region
        $region49: #{tpu_custom_call.1} parent=11 // pred_check
          %p500 = pneg %p332
        $region50: #{tpu_custom_call.1} parent=11 // pred_check_branch
          %502 = sbr.rel (%p500) target = $region52
        $region51: #{tpu_custom_call.1} parent=11 // pred_region
          _
        $region52: #{tpu_custom_call.1} parent=11 // pred_fallthru
          _
        // Predicated region
        $region53: #{tpu_custom_call.1} parent=11 // pred_check
          %p503 = pneg %p353
        $region54: #{tpu_custom_call.1} parent=11 // pred_check_branch
          %505 = sbr.rel (%p503) target = $region56
        $region55: #{tpu_custom_call.1} parent=11 // pred_region
          _
        $region56: #{tpu_custom_call.1} parent=11 // pred_fallthru
          _
        // Predicated region
        $region57: #{tpu_custom_call.1} parent=11 // pred_check
          %p506 = pneg %p374
        $region58: #{tpu_custom_call.1} parent=11 // pred_check_branch
          %508 = sbr.rel (%p506) target = $region60
        $region59: #{tpu_custom_call.1} parent=11 // pred_region
          _
        $region60: #{tpu_custom_call.1} parent=11 // pred_fallthru
          _
      $region12: #{tpu_custom_call.1} parent=5 // pred_fallthru
        _
      %p509 = scmp.lt.s32.totalorder %s30, 4
      // Predicated region
      $region61: #{tpu_custom_call.1} parent=5 // pred_check
        %p510 = pneg %p509
      $region62: #{tpu_custom_call.1} parent=5 // pred_check_branch
        %512 = sbr.rel (%p510) target = $region64
      $region63: #{tpu_custom_call.1} parent=5 // pred_region
        // Predicated region
        $region65: #{tpu_custom_call.1} parent=63 // pred_check
          %p513 = pneg %p64
        $region66: #{tpu_custom_call.1} parent=63 // pred_check_branch
          %515 = sbr.rel (%p513) target = $region68
        $region67: #{tpu_custom_call.1} parent=63 // pred_region
          %p516 = scmp.lt.s32.totalorder %s37, 1
          %s517 = scalar_select %p516, %s37, 1
          %p518 = scmp.lt.s32.totalorder %s38, 1
          %s519 = scalar_select %p518, %s38, 1
          %s520 = smul.addr %s517, 2
          %s521 = sadd.s32 %s519, %s520
          %s522 = smul.addr %s521, 8
          %s523 = scalar_lea.vmem %s0, %s522
        $region68: #{tpu_custom_call.1} parent=63 // pred_fallthru
          _
        // Predicated region
        $region69: #{tpu_custom_call.1} parent=63 // pred_check
          %p524 = pneg %p90
        $region70: #{tpu_custom_call.1} parent=63 // pred_check_branch
          %526 = sbr.rel (%p524) target = $region72
        $region71: #{tpu_custom_call.1} parent=63 // pred_region
          %p527 = scmp.lt.s32.totalorder %s37, 1
          %s528 = scalar_select %p527, %s37, 1
          %s529 = smul.addr %s528, 2
          %s530 = smul.addr %s529, 4
          %s531 = scalar_lea.vmem %s1, %s530
        $region72: #{tpu_custom_call.1} parent=63 // pred_fallthru
          _
        // Predicated region
        $region73: #{tpu_custom_call.1} parent=63 // pred_check
          %p532 = pneg %p116
        $region74: #{tpu_custom_call.1} parent=63 // pred_check_branch
          %534 = sbr.rel (%p532) target = $region76
        $region75: #{tpu_custom_call.1} parent=63 // pred_region
          %s535 = sand.u32 %s106, 1
          %s536 = scalar_lea.sflag [#allocation5], %s535
          %s537 = sand.u32 %s106, 1
          %s538 = scalar_lea.vmem [#allocation4], %s537
          %s540 = ssub.s32 16, 16
          %541 = vsyncadd %s536, %s540
          %s542 = smul.addr %s37, 16
          %s543 = scalar_lea.hbm %s2, %s542
          %s545 = sshll.u32 %s538, 4
          %s546 = int_to_ptr.vmem [resolvable:$true] %s545
          %548 = dma.hbm_to_vmem [thread:$0]  %s543, 16, %s546, %s536
        $region76: #{tpu_custom_call.1} parent=63 // pred_fallthru
          _
      $region64: #{tpu_custom_call.1} parent=5 // pred_fallthru
        _
      %p549 = scmp.le.s32.totalorder 1, %s30
      %p550 = scmp.lt.s32.totalorder %s30, 5
      %p551 = pnand %p549, %p550
      %p552 = pneg %p551
      // Predicated region
      $region77: #{tpu_custom_call.1} parent=5 // pred_check
        _
      $region78: #{tpu_custom_call.1} parent=5 // pred_check_branch
        %554 = sbr.rel (%p551) target = $region80
      $region79: #{tpu_custom_call.1} parent=5 // pred_region
        %s555 = ssub.s32 %s30, 1
        %s556 = sand.u32 %s109, 1
        %s557 = scalar_lea.sflag [#allocation5], %s556
        %s558 = sand.u32 %s109, 1
        %s559 = scalar_lea.vmem [#allocation4], %s558
        // Predicated region
        $region81: #{tpu_custom_call.1} parent=79 // pred_check
          %p560 = pneg %p122
        $region82: #{tpu_custom_call.1} parent=79 // pred_check_branch
          %562 = sbr.rel (%p560) target = $region84
        $region83: #{tpu_custom_call.1} parent=79 // pred_region
          %563 = dma.done %s557, 16
        $region84: #{tpu_custom_call.1} parent=79 // pred_fallthru
          _
        // Predicated region
        $region85: #{tpu_custom_call.1} parent=79 // pred_check
          %p564 = pneg %p143
        $region86: #{tpu_custom_call.1} parent=79 // pred_check_branch
          %566 = sbr.rel (%p564) target = $region88
        $region87: #{tpu_custom_call.1} parent=79 // pred_region
          %567 = dma.done [#allocation8], 256
        $region88: #{tpu_custom_call.1} parent=79 // pred_fallthru
          _
        // Predicated region
        $region89: #{tpu_custom_call.1} parent=79 // pred_check
          %p568 = pneg %p164
        $region90: #{tpu_custom_call.1} parent=79 // pred_check_branch
          %570 = sbr.rel (%p568) target = $region92
        $region91: #{tpu_custom_call.1} parent=79 // pred_region
          %571 = dma.done [#allocation8], 256
        $region92: #{tpu_custom_call.1} parent=79 // pred_fallthru
          _
        // Predicated region
        $region93: #{tpu_custom_call.1} parent=79 // pred_check
          %p572 = pneg %p185
        $region94: #{tpu_custom_call.1} parent=79 // pred_check_branch
          %574 = sbr.rel (%p572) target = $region96
        $region95: #{tpu_custom_call.1} parent=79 // pred_region
          %575 = dma.done [#allocation11], 256
        $region96: #{tpu_custom_call.1} parent=79 // pred_fallthru
          _
        // Predicated region
        $region97: #{tpu_custom_call.1} parent=79 // pred_check
          %p576 = pneg %p206
        $region98: #{tpu_custom_call.1} parent=79 // pred_check_branch
          %578 = sbr.rel (%p576) target = $region100
        $region99: #{tpu_custom_call.1} parent=79 // pred_region
          %579 = dma.done [#allocation11], 256
        $region100: #{tpu_custom_call.1} parent=79 // pred_fallthru
          _
        // Predicated region
        $region101: #{tpu_custom_call.1} parent=79 // pred_check
          %p580 = pneg %p227
        $region102: #{tpu_custom_call.1} parent=79 // pred_check_branch
          %582 = sbr.rel (%p580) target = $region104
        $region103: #{tpu_custom_call.1} parent=79 // pred_region
          %583 = dma.done [#allocation14], 16
        $region104: #{tpu_custom_call.1} parent=79 // pred_fallthru
          _
        // Predicated region
        $region105: #{tpu_custom_call.1} parent=79 // pred_check
          %p584 = pneg %p248
        $region106: #{tpu_custom_call.1} parent=79 // pred_check_branch
          %586 = sbr.rel (%p584) target = $region108
        $region107: #{tpu_custom_call.1} parent=79 // pred_region
          %587 = dma.done [#allocation14], 16
        $region108: #{tpu_custom_call.1} parent=79 // pred_fallthru
          _
        %p588 = scmp.lt.s32.totalorder %s39, 1
        %s589 = scalar_select %p588, %s39, 1
        %p590 = scmp.lt.s32.totalorder %s40, 1
        %s591 = scalar_select %p590, %s40, 1
        %s592 = smul.addr %s589, 2
        %s593 = sadd.s32 %s591, %s592
        %s594 = smul.addr %s593, 8
        %s595 = scalar_lea.vmem %s0, %s594
        %p596 = pneg %p70
        %p597 = pneg %p67
        %p598 = scmp.lt.s32.totalorder %s39, 1
        %s599 = scalar_select %p598, %s39, 1
        %s600 = smul.addr %s599, 2
        %s601 = smul.addr %s600, 4
        %s602 = scalar_lea.vmem %s1, %s601
        %p603 = pneg %p96
        %p604 = pneg %p93
        %s605 = sand.u32 %s109, 1
        %s606 = scalar_lea.sflag [#allocation5], %s605
        %s607 = sand.u32 %s109, 1
        %s608 = scalar_lea.vmem [#allocation4], %s607
        %p609 = pneg %p122
        %p610 = pneg %p119
        %p611 = pneg %p143
        %p612 = pneg %p140
        %p613 = pneg %p164
        %p614 = pneg %p161
        %p615 = pneg %p185
        %p616 = pneg %p182
        %p617 = pneg %p206
        %p618 = pneg %p203
        %p619 = pneg %p227
        %p620 = pneg %p224
        %p621 = pneg %p248
        %p622 = pneg %p245
        %p623 = pneg %p269
        %p624 = pneg %p266
        %p625 = pneg %p290
        %p626 = pneg %p287
        %p627 = pneg %p311
        %p628 = pneg %p308
        %p629 = pneg %p332
        %p630 = pneg %p329
        %p631 = pneg %p353
        %p632 = pneg %p350
        %p633 = pneg %p374
        %p634 = pneg %p371
        %p635 = pneg %p402
        %p636 = pneg %p399
        %s637 = sand.u32 %s389, 1
        %s638 = scalar_lea.sflag [#allocation6], %s637
        %s639 = sand.u32 %s389, 1
        %s640 = smul.addr %s639, 8
        %s641 = scalar_lea.vmem [#allocation16], %s640
        %p642 = scmp.lt.s32.totalorder %s39, 1
        %s643 = scalar_select %p642, %s39, 1
        %p644 = scmp.lt.s32.totalorder %s40, 1
        %s645 = scalar_select %p644, %s40, 1
        %s646 = smul.addr %s643, 2
        %s647 = sadd.s32 %s645, %s646
        %s648 = smul.addr %s647, 8
        %s649 = scalar_lea.vmem %s0, %s648
        %p650 = scmp.lt.s32.totalorder %s39, 1
        %s651 = scalar_select %p650, %s39, 1
        %s652 = smul.addr %s651, 2
        %s653 = smul.addr %s652, 4
        %s654 = scalar_lea.vmem %s1, %s653
        %p656 = scmp.eq.s32.totalorder %s40, 0
        // Predicated region
        $region109: #{tpu_custom_call.1} parent=79 // pred_check
          %p657 = pneg %p656
        $region110: #{tpu_custom_call.1} parent=79 // pred_check_branch
          %659 = sbr.rel (%p657) target = $region112
        $region111: #{tpu_custom_call.1} parent=79 // pred_region
          %v660 = vld [vmem:[%s654] sm:$0xf]
          %v661 = vld [vmem:[%s654 + $0x4] sm:$0xf]
          %v662 = vld [vmem:[#allocation9] sm:$0xf]
          %v663 = vld [vmem:[#allocation9 + $0x4] sm:$0xf]
          %v664 = vld [vmem:[#allocation9 + $0x8] sm:$0xf]
          %v665 = vld [vmem:[#allocation9 + $0xc] sm:$0xf]
          %v668 = vunpack.c.l.b16 %v660
          %v669 = vunpack.c.l.b16 %v661
          %v670 = vpack.c.b16 %v669, %v668
          %v675 = vunpack.c.l.b16 %v662
          %v676 = vunpack.c.l.b16 %v663
          %v677 = vunpack.c.l.b16 %v664
          %v678 = vunpack.c.l.b16 %v665
          %v679 = vpack.c.b16 %v676, %v675
          %v680 = vpack.c.b16 %v678, %v677
          %vm683 = vcmask 261120
          %v685 = vsel %vm683, %v670, 0
          %687 = vmatprep.subr.bf16.mxu0 0
          %688 = vmatpush1.bf16.msra.mxu0 0
          %689 = vmatprep.subr.bf16.mxu0 0
          %690 = vmatpush1.bf16.msra.mxu0 0
          %691 = vmatprep.subr.bf16.mxu0 0
          %692 = vmatpush1.bf16.msra.mxu0 0
          %693 = vmatprep.subr.bf16.mxu0 0
          %694 = vmatpush1.bf16.msra.mxu0 0
          %695 = vmatprep.subr.bf16.mxu0 0
          %696 = vmatpush1.bf16.msra.mxu0 0
          %697 = vmatprep.subr.bf16.mxu0 0
          %698 = vmatpush1.bf16.msra.mxu0 0
          %699 = vmatprep.subr.bf16.mxu0 0
          %700 = vmatpush1.bf16.msra.mxu0 %v680
          %701 = vmatprep.subr.bf16.mxu0 0
          %702 = vmatpush1.bf16.msra.mxu0 %v679
          %703 = vmatprep.subr.bf16.mxu0 0
          %704 = vmatpush2.bf16.msra.mxu0 0
          %705 = vmatprep.subr.bf16.mxu0 0
          %706 = vmatpush2.bf16.msra.mxu0 0
          %707 = vmatprep.subr.bf16.mxu0 0
          %708 = vmatpush2.bf16.msra.mxu0 0
          %709 = vmatprep.subr.bf16.mxu0 0
          %710 = vmatpush2.bf16.msra.mxu0 0
          %711 = vmatprep.subr.bf16.mxu0 0
          %712 = vmatpush2.bf16.msra.mxu0 0
          %713 = vmatprep.subr.bf16.mxu0 0
          %714 = vmatpush2.bf16.msra.mxu0 0
          %715 = vmatprep.subr.bf16.mxu0 0
          %716 = vmatpush2.bf16.msra.mxu0 0
          %717 = vmatprep.subr.bf16.mxu0 0
          %718 = vmatpush2.bf16.msra.mxu0 0
          %719 = vmatprep.mubr.bf16.mxu0 0
          %720 = vmatmul.mubr.bf16.gmra.mxu0 %v685
          %v721 = vpop.f32.mrf.mxu0
          %v722 = vadd.f32 0.0, %v721
          %v723 = vpop.f32.mrf.mxu0
          %v724 = vpop.f32.mrf.mxu0
          %v725 = vadd.f32 0.0, %v724
          %v726 = vpop.f32.mrf.mxu0
          %727 = vdwg.mxu0
          %v728 = vpack.c.bf16 %v725, %v722
          %v730 = vunpack.c.l.b16 %v728
          %v731 = vunpack.c.h.b16 %v728
          %v732 = vpack.c.b16 %v730, %v730
          %v733 = vpack.c.b16 %v731, %v731
          %vm736 = vcmask 257024
          %737 = vst.msk [vmem:[#allocation2] sm:$0xf] %vm736, %v732
          %738 = vst.msk [vmem:[#allocation2 + $0x4] sm:$0xf] %vm736, %v733
          %v739 = vld [vmem:[#allocation10] sm:$0xf]
          %v740 = vld [vmem:[#allocation10 + $0x4] sm:$0xf]
          %v741 = vld [vmem:[#allocation10 + $0x8] sm:$0xf]
          %v742 = vld [vmem:[#allocation10 + $0xc] sm:$0xf]
          %v747 = vunpack.c.l.b16 %v739
          %v748 = vunpack.c.l.b16 %v740
          %v749 = vunpack.c.l.b16 %v741
          %v750 = vunpack.c.l.b16 %v742
          %v751 = vpack.c.b16 %v748, %v747
          %v752 = vpack.c.b16 %v750, %v749
          %755 = vmatprep.subr.bf16.mxu0 0
          %756 = vmatpush1.bf16.msra.mxu0 0
          %757 = vmatprep.subr.bf16.mxu0 0
          %758 = vmatpush1.bf16.msra.mxu0 0
          %759 = vmatprep.subr.bf16.mxu0 0
          %760 = vmatpush1.bf16.msra.mxu0 0
          %761 = vmatprep.subr.bf16.mxu0 0
          %762 = vmatpush1.bf16.msra.mxu0 0
          %763 = vmatprep.subr.bf16.mxu0 0
          %764 = vmatpush1.bf16.msra.mxu0 0
          %765 = vmatprep.subr.bf16.mxu0 0
          %766 = vmatpush1.bf16.msra.mxu0 0
          %767 = vmatprep.subr.bf16.mxu0 0
          %768 = vmatpush1.bf16.msra.mxu0 %v752
          %769 = vmatprep.subr.bf16.mxu0 0
          %770 = vmatpush1.bf16.msra.mxu0 %v751
          %771 = vmatprep.subr.bf16.mxu0 0
          %772 = vmatpush2.bf16.msra.mxu0 0
          %773 = vmatprep.subr.bf16.mxu0 0
          %774 = vmatpush2.bf16.msra.mxu0 0
          %775 = vmatprep.subr.bf16.mxu0 0
          %776 = vmatpush2.bf16.msra.mxu0 0
          %777 = vmatprep.subr.bf16.mxu0 0
          %778 = vmatpush2.bf16.msra.mxu0 0
          %779 = vmatprep.subr.bf16.mxu0 0
          %780 = vmatpush2.bf16.msra.mxu0 0
          %781 = vmatprep.subr.bf16.mxu0 0
          %782 = vmatpush2.bf16.msra.mxu0 0
          %783 = vmatprep.subr.bf16.mxu0 0
          %784 = vmatpush2.bf16.msra.mxu0 0
          %785 = vmatprep.subr.bf16.mxu0 0
          %786 = vmatpush2.bf16.msra.mxu0 0
          %787 = vmatprep.mubr.bf16.mxu0 0
          %788 = vmatmul.mubr.bf16.gmra.mxu0 %v685
          %v789 = vpop.f32.mrf.mxu0
          %v790 = vadd.f32 0.0, %v789
          %v791 = vpop.f32.mrf.mxu0
          %v792 = vpop.f32.mrf.mxu0
          %v793 = vadd.f32 0.0, %v792
          %v794 = vpop.f32.mrf.mxu0
          %795 = vdwg.mxu0
          %v796 = vpack.c.bf16 %v793, %v790
          %v798 = vunpack.c.l.b16 %v796
          %v799 = vunpack.c.h.b16 %v796
          %v800 = vpack.c.b16 %v798, %v798
          %v801 = vpack.c.b16 %v799, %v799
          %804 = vst.msk [vmem:[#allocation3] sm:$0xf] %vm736, %v800
          %805 = vst.msk [vmem:[#allocation3 + $0x4] sm:$0xf] %vm736, %v801
        $region112: #{tpu_custom_call.1} parent=79 // pred_fallthru
          _
        %v806 = vld [vmem:[%s649] sm:$0xff]
        %v807 = vpack.c.bf16 %v806, %v806
        %v808 = vld [vmem:[#allocation7] sm:$0xf]
        %v809 = vld [vmem:[#allocation7 + $0x4] sm:$0xf]
        %v810 = vld [vmem:[#allocation7 + $0x8] sm:$0xf]
        %v811 = vld [vmem:[#allocation7 + $0xc] sm:$0xf]
        %v816 = vunpack.c.l.b16 %v808
        %v817 = vunpack.c.l.b16 %v809
        %v818 = vunpack.c.l.b16 %v810
        %v819 = vunpack.c.l.b16 %v811
        %v820 = vpack.c.b16 %v817, %v816
        %v821 = vpack.c.b16 %v819, %v818
        %vm824 = vcmask 261120
        %v826 = vsel %vm824, %v807, 0
        %828 = vmatprep.subr.bf16.mxu0 0
        %829 = vmatpush1.bf16.msra.mxu0 0
        %830 = vmatprep.subr.bf16.mxu0 0
        %831 = vmatpush1.bf16.msra.mxu0 0
        %832 = vmatprep.subr.bf16.mxu0 0
        %833 = vmatpush1.bf16.msra.mxu0 0
        %834 = vmatprep.subr.bf16.mxu0 0
        %835 = vmatpush1.bf16.msra.mxu0 0
        %836 = vmatprep.subr.bf16.mxu0 0
        %837 = vmatpush1.bf16.msra.mxu0 0
        %838 = vmatprep.subr.bf16.mxu0 0
        %839 = vmatpush1.bf16.msra.mxu0 0
        %840 = vmatprep.subr.bf16.mxu0 0
        %841 = vmatpush1.bf16.msra.mxu0 %v821
        %842 = vmatprep.subr.bf16.mxu0 0
        %843 = vmatpush1.bf16.msra.mxu0 %v820
        %844 = vmatprep.subr.bf16.mxu0 0
        %845 = vmatpush2.bf16.msra.mxu0 0
        %846 = vmatprep.subr.bf16.mxu0 0
        %847 = vmatpush2.bf16.msra.mxu0 0
        %848 = vmatprep.subr.bf16.mxu0 0
        %849 = vmatpush2.bf16.msra.mxu0 0
        %850 = vmatprep.subr.bf16.mxu0 0
        %851 = vmatpush2.bf16.msra.mxu0 0
        %852 = vmatprep.subr.bf16.mxu0 0
        %853 = vmatpush2.bf16.msra.mxu0 0
        %854 = vmatprep.subr.bf16.mxu0 0
        %855 = vmatpush2.bf16.msra.mxu0 0
        %856 = vmatprep.subr.bf16.mxu0 0
        %857 = vmatpush2.bf16.msra.mxu0 0
        %858 = vmatprep.subr.bf16.mxu0 0
        %859 = vmatpush2.bf16.msra.mxu0 0
        %860 = vmatprep.mubr.bf16.mxu0 0
        %861 = vmatmul.mubr.bf16.gmra.mxu0 %v826
        %v862 = vpop.f32.mrf.mxu0
        %v863 = vadd.f32 0.0, %v862
        %v864 = vpop.f32.mrf.mxu0
        %v865 = vpop.f32.mrf.mxu0
        %v866 = vpop.f32.mrf.mxu0
        %867 = vdwg.mxu0
        %v868 = vld [vmem:[%s559] sm:$0x1]
        %v870 = vlaneseq
        %v871 = vshrl.u32 %v870, 7
        %v872 = vsub.s32 0, %v871
        %v873 = vrot.slane %v868, %v872
        %v875 = vld [vmem:[#allocation2] sm:$0xf]
        %v876 = vld [vmem:[#allocation2 + $0x4] sm:$0xf]
        %v877 = vld [vmem:[#allocation3] sm:$0xf]
        %v878 = vld [vmem:[#allocation3 + $0x4] sm:$0xf]
        %v879 = vpack.c.bf16 %v863, %v863
        %v882 = vunpack.c.l.b16 %v875
        %v883 = vunpack.c.l.b16 %v876
        %v884 = vpack.c.b16 %v883, %v882
        %vm885 = vcmask 64512
        %v887 = vsel %vm885, %v879, 0
        %v890 = vsel %vm885, %v884, 0
        %892 = vmatprep.subr.bf16.mxu0 0
        %893 = vmatpush1.bf16.xpose.msra.mxu0 0
        %894 = vmatprep.subr.bf16.mxu0 0
        %895 = vmatpush1.bf16.xpose.msra.mxu0 0
        %896 = vmatprep.subr.bf16.mxu0 0
        %897 = vmatpush1.bf16.xpose.msra.mxu0 0
        %898 = vmatprep.subr.bf16.mxu0 0
        %899 = vmatpush1.bf16.xpose.msra.mxu0 0
        %900 = vmatprep.subr.bf16.mxu0 0
        %901 = vmatpush1.bf16.xpose.msra.mxu0 0
        %902 = vmatprep.subr.bf16.mxu0 0
        %903 = vmatpush1.bf16.xpose.msra.mxu0 0
        %904 = vmatprep.subr.bf16.mxu0 0
        %905 = vmatpush1.bf16.xpose.msra.mxu0 0
        %906 = vmatprep.subr.bf16.mxu0 0
        %907 = vmatpush1.bf16.xpose.msra.mxu0 %v890
        %908 = vmatprep.subr.bf16.mxu0 0
        %909 = vmatpush2.bf16.xpose.msra.mxu0 0
        %910 = vmatprep.subr.bf16.mxu0 0
        %911 = vmatpush2.bf16.xpose.msra.mxu0 0
        %912 = vmatprep.subr.bf16.mxu0 0
        %913 = vmatpush2.bf16.xpose.msra.mxu0 0
        %914 = vmatprep.subr.bf16.mxu0 0
        %915 = vmatpush2.bf16.xpose.msra.mxu0 0
        %916 = vmatprep.subr.bf16.mxu0 0
        %917 = vmatpush2.bf16.xpose.msra.mxu0 0
        %918 = vmatprep.subr.bf16.mxu0 0
        %919 = vmatpush2.bf16.xpose.msra.mxu0 0
        %920 = vmatprep.subr.bf16.mxu0 0
        %921 = vmatpush2.bf16.xpose.msra.mxu0 0
        %922 = vmatprep.subr.bf16.mxu0 0
        %923 = vmatpush2.bf16.xpose.msra.mxu0 0
        %924 = vmatprep.mubr.bf16.mxu0 0
        %925 = vmatmul.mubr.bf16.gmra.mxu0 %v887
        %v926 = vpop.f32.mrf.mxu0
        %v927 = vadd.f32 %v873, %v926
        %v928 = vpop.f32.mrf.mxu0
        %v929 = vpop.f32.mrf.mxu0
        %v930 = vpop.f32.mrf.mxu0
        %931 = vdwg.mxu0
        %vm932 = vcmask 130048
        %v933 = vsel %vm932, %v927, -inf
        %934 = vmax.xlane.f32.xlu0 %v933
        %v935 = vpop.xlane.xlu0 %934
        %v936 = vsub.f32 %v927, %v935
        %v937 = vmul.f32 %v936, 1.442695
        %v938 = vpow.pop %v937
        %v939 = vsel %vm932, %v938, 0.0
        %940 = vadd.xlane.f32.xlu0 %v939
        %v941 = vpop.xlane.xlu0 %940
        %v942 = vrcp.pop %v941
        %v943 = vmul.f32 %v938, %v942
        %v944 = vpack.c.bf16 %v943, %v943
        %v947 = vunpack.c.l.b16 %v877
        %v948 = vunpack.c.l.b16 %v878
        %v949 = vpack.c.b16 %v948, %v947
        %v952 = vsel %vm932, %v944, 0
        %954 = vmatprep.subr.bf16.mxu0 0
        %955 = vmatpush1.bf16.msra.mxu0 0
        %956 = vmatprep.subr.bf16.mxu0 0
        %957 = vmatpush1.bf16.msra.mxu0 0
        %958 = vmatprep.subr.bf16.mxu0 0
        %959 = vmatpush1.bf16.msra.mxu0 0
        %960 = vmatprep.subr.bf16.mxu0 0
        %961 = vmatpush1.bf16.msra.mxu0 0
        %962 = vmatprep.subr.bf16.mxu0 0
        %963 = vmatpush1.bf16.msra.mxu0 0
        %964 = vmatprep.subr.bf16.mxu0 0
        %965 = vmatpush1.bf16.msra.mxu0 0
        %966 = vmatprep.subr.bf16.mxu0 0
        %967 = vmatpush1.bf16.msra.mxu0 0
        %968 = vmatprep.subr.bf16.mxu0 0
        %969 = vmatpush1.bf16.msra.mxu0 %v949
        %970 = vmatprep.subr.bf16.mxu0 0
        %971 = vmatpush2.bf16.msra.mxu0 0
        %972 = vmatprep.subr.bf16.mxu0 0
        %973 = vmatpush2.bf16.msra.mxu0 0
        %974 = vmatprep.subr.bf16.mxu0 0
        %975 = vmatpush2.bf16.msra.mxu0 0
        %976 = vmatprep.subr.bf16.mxu0 0
        %977 = vmatpush2.bf16.msra.mxu0 0
        %978 = vmatprep.subr.bf16.mxu0 0
        %979 = vmatpush2.bf16.msra.mxu0 0
        %980 = vmatprep.subr.bf16.mxu0 0
        %981 = vmatpush2.bf16.msra.mxu0 0
        %982 = vmatprep.subr.bf16.mxu0 0
        %983 = vmatpush2.bf16.msra.mxu0 0
        %984 = vmatprep.subr.bf16.mxu0 0
        %985 = vmatpush2.bf16.msra.mxu0 0
        %986 = vmatprep.mubr.bf16.mxu0 0
        %987 = vmatmul.mubr.bf16.gmra.mxu0 %v952
        %v988 = vpop.f32.mrf.mxu0
        %v989 = vadd.f32 0.0, %v988
        %v990 = vpop.f32.mrf.mxu0
        %v991 = vpop.f32.mrf.mxu0
        %v992 = vpop.f32.mrf.mxu0
        %993 = vdwg.mxu0
        %v994 = vpack.c.bf16 %v989, %v989
        %996 = vrot.lane.b32.xlu0 %v879, 120
        %v997 = vpop.permute.xlu0 %996
        %998 = vrot.lane.b32.xlu0 %v884, 120
        %v999 = vpop.permute.xlu0 %998
        %v1001 = vsel %vm885, %v997, 0
        %v1004 = vsel %vm885, %v999, 0
        %1006 = vmatprep.subr.bf16.mxu0 0
        %1007 = vmatpush1.bf16.xpose.msra.mxu0 0
        %1008 = vmatprep.subr.bf16.mxu0 0
        %1009 = vmatpush1.bf16.xpose.msra.mxu0 0
        %1010 = vmatprep.subr.bf16.mxu0 0
        %1011 = vmatpush1.bf16.xpose.msra.mxu0 0
        %1012 = vmatprep.subr.bf16.mxu0 0
        %1013 = vmatpush1.bf16.xpose.msra.mxu0 0
        %1014 = vmatprep.subr.bf16.mxu0 0
        %1015 = vmatpush1.bf16.xpose.msra.mxu0 0
        %1016 = vmatprep.subr.bf16.mxu0 0
        %1017 = vmatpush1.bf16.xpose.msra.mxu0 0
        %1018 = vmatprep.subr.bf16.mxu0 0
        %1019 = vmatpush1.bf16.xpose.msra.mxu0 0
        %1020 = vmatprep.subr.bf16.mxu0 0
        %1021 = vmatpush1.bf16.xpose.msra.mxu0 %v1004
        %1022 = vmatprep.subr.bf16.mxu0 0
        %1023 = vmatpush2.bf16.xpose.msra.mxu0 0
        %1024 = vmatprep.subr.bf16.mxu0 0
        %1025 = vmatpush2.bf16.xpose.msra.mxu0 0
        %1026 = vmatprep.subr.bf16.mxu0 0
        %1027 = vmatpush2.bf16.xpose.msra.mxu0 0
        %1028 = vmatprep.subr.bf16.mxu0 0
        %1029 = vmatpush2.bf16.xpose.msra.mxu0 0
        %1030 = vmatprep.subr.bf16.mxu0 0
        %1031 = vmatpush2.bf16.xpose.msra.mxu0 0
        %1032 = vmatprep.subr.bf16.mxu0 0
        %1033 = vmatpush2.bf16.xpose.msra.mxu0 0
        %1034 = vmatprep.subr.bf16.mxu0 0
        %1035 = vmatpush2.bf16.xpose.msra.mxu0 0
        %1036 = vmatprep.subr.bf16.mxu0 0
        %1037 = vmatpush2.bf16.xpose.msra.mxu0 0
        %1038 = vmatprep.mubr.bf16.mxu0 0
        %1039 = vmatmul.mubr.bf16.gmra.mxu0 %v1001
        %v1040 = vpop.f32.mrf.mxu0
        %v1041 = vadd.f32 %v873, %v1040
        %v1042 = vpop.f32.mrf.mxu0
        %v1043 = vpop.f32.mrf.mxu0
        %v1044 = vpop.f32.mrf.mxu0
        %1045 = vdwg.mxu0
        %v1046 = vsel %vm932, %v1041, -inf
        %1047 = vmax.xlane.f32.xlu0 %v1046
        %v1048 = vpop.xlane.xlu0 %1047
        %v1049 = vsub.f32 %v1041, %v1048
        %v1050 = vmul.f32 %v1049, 1.442695
        %v1051 = vpow.pop %v1050
        %v1052 = vsel %vm932, %v1051, 0.0
        %1053 = vadd.xlane.f32.xlu0 %v1052
        %v1054 = vpop.xlane.xlu0 %1053
        %v1055 = vrcp.pop %v1054
        %v1056 = vmul.f32 %v1051, %v1055
        %v1057 = vpack.c.bf16 %v1056, %v1056
        %1058 = vrot.lane.b32.xlu0 %v949, 120
        %v1059 = vpop.permute.xlu0 %1058
        %v1062 = vsel %vm932, %v1057, 0
        %1064 = vmatprep.subr.bf16.mxu0 0
        %1065 = vmatpush1.bf16.msra.mxu0 0
        %1066 = vmatprep.subr.bf16.mxu0 0
        %1067 = vmatpush1.bf16.msra.mxu0 0
        %1068 = vmatprep.subr.bf16.mxu0 0
        %1069 = vmatpush1.bf16.msra.mxu0 0
        %1070 = vmatprep.subr.bf16.mxu0 0
        %1071 = vmatpush1.bf16.msra.mxu0 0
        %1072 = vmatprep.subr.bf16.mxu0 0
        %1073 = vmatpush1.bf16.msra.mxu0 0
        %1074 = vmatprep.subr.bf16.mxu0 0
        %1075 = vmatpush1.bf16.msra.mxu0 0
        %1076 = vmatprep.subr.bf16.mxu0 0
        %1077 = vmatpush1.bf16.msra.mxu0 0
        %1078 = vmatprep.subr.bf16.mxu0 0
        %1079 = vmatpush1.bf16.msra.mxu0 %v1059
        %1080 = vmatprep.subr.bf16.mxu0 0
        %1081 = vmatpush2.bf16.msra.mxu0 0
        %1082 = vmatprep.subr.bf16.mxu0 0
        %1083 = vmatpush2.bf16.msra.mxu0 0
        %1084 = vmatprep.subr.bf16.mxu0 0
        %1085 = vmatpush2.bf16.msra.mxu0 0
        %1086 = vmatprep.subr.bf16.mxu0 0
        %1087 = vmatpush2.bf16.msra.mxu0 0
        %1088 = vmatprep.subr.bf16.mxu0 0
        %1089 = vmatpush2.bf16.msra.mxu0 0
        %1090 = vmatprep.subr.bf16.mxu0 0
        %1091 = vmatpush2.bf16.msra.mxu0 0
        %1092 = vmatprep.subr.bf16.mxu0 0
        %1093 = vmatpush2.bf16.msra.mxu0 0
        %1094 = vmatprep.subr.bf16.mxu0 0
        %1095 = vmatpush2.bf16.msra.mxu0 0
        %1096 = vmatprep.mubr.bf16.mxu0 0
        %1097 = vmatmul.mubr.bf16.gmra.mxu0 %v1062
        %v1098 = vpop.f32.mrf.mxu0
        %v1099 = vadd.f32 0.0, %v1098
        %v1100 = vpop.f32.mrf.mxu0
        %v1101 = vpop.f32.mrf.mxu0
        %v1102 = vpop.f32.mrf.mxu0
        %1103 = vdwg.mxu0
        %v1104 = vpack.c.bf16 %v1099, %v1099
        %1105 = vrot.lane.b32.xlu0 %v879, 112
        %v1106 = vpop.permute.xlu0 %1105
        %1107 = vrot.lane.b32.xlu0 %v884, 112
        %v1108 = vpop.permute.xlu0 %1107
        %v1110 = vsel %vm885, %v1106, 0
        %v1113 = vsel %vm885, %v1108, 0
        %1115 = vmatprep.subr.bf16.mxu0 0
        %1116 = vmatpush1.bf16.xpose.msra.mxu0 0
        %1117 = vmatprep.subr.bf16.mxu0 0
        %1118 = vmatpush1.bf16.xpose.msra.mxu0 0
        %1119 = vmatprep.subr.bf16.mxu0 0
        %1120 = vmatpush1.bf16.xpose.msra.mxu0 0
        %1121 = vmatprep.subr.bf16.mxu0 0
        %1122 = vmatpush1.bf16.xpose.msra.mxu0 0
        %1123 = vmatprep.subr.bf16.mxu0 0
        %1124 = vmatpush1.bf16.xpose.msra.mxu0 0
        %1125 = vmatprep.subr.bf16.mxu0 0
        %1126 = vmatpush1.bf16.xpose.msra.mxu0 0
        %1127 = vmatprep.subr.bf16.mxu0 0
        %1128 = vmatpush1.bf16.xpose.msra.mxu0 0
        %1129 = vmatprep.subr.bf16.mxu0 0
        %1130 = vmatpush1.bf16.xpose.msra.mxu0 %v1113
        %1131 = vmatprep.subr.bf16.mxu0 0
        %1132 = vmatpush2.bf16.xpose.msra.mxu0 0
        %1133 = vmatprep.subr.bf16.mxu0 0
        %1134 = vmatpush2.bf16.xpose.msra.mxu0 0
        %1135 = vmatprep.subr.bf16.mxu0 0
        %1136 = vmatpush2.bf16.xpose.msra.mxu0 0
        %1137 = vmatprep.subr.bf16.mxu0 0
        %1138 = vmatpush2.bf16.xpose.msra.mxu0 0
        %1139 = vmatprep.subr.bf16.mxu0 0
        %1140 = vmatpush2.bf16.xpose.msra.mxu0 0
        %1141 = vmatprep.subr.bf16.mxu0 0
        %1142 = vmatpush2.bf16.xpose.msra.mxu0 0
        %1143 = vmatprep.subr.bf16.mxu0 0
        %1144 = vmatpush2.bf16.xpose.msra.mxu0 0
        %1145 = vmatprep.subr.bf16.mxu0 0
        %1146 = vmatpush2.bf16.xpose.msra.mxu0 0
        %1147 = vmatprep.mubr.bf16.mxu0 0
        %1148 = vmatmul.mubr.bf16.gmra.mxu0 %v1110
        %v1149 = vpop.f32.mrf.mxu0
        %v1150 = vadd.f32 %v873, %v1149
        %v1151 = vpop.f32.mrf.mxu0
        %v1152 = vpop.f32.mrf.mxu0
        %v1153 = vpop.f32.mrf.mxu0
        %1154 = vdwg.mxu0
        %v1155 = vsel %vm932, %v1150, -inf
        %1156 = vmax.xlane.f32.xlu0 %v1155
        %v1157 = vpop.xlane.xlu0 %1156
        %v1158 = vsub.f32 %v1150, %v1157
        %v1159 = vmul.f32 %v1158, 1.442695
        %v1160 = vpow.pop %v1159
        %v1161 = vsel %vm932, %v1160, 0.0
        %1162 = vadd.xlane.f32.xlu0 %v1161
        %v1163 = vpop.xlane.xlu0 %1162
        %v1164 = vrcp.pop %v1163
        %v1165 = vmul.f32 %v1160, %v1164
        %v1166 = vpack.c.bf16 %v1165, %v1165
        %1167 = vrot.lane.b32.xlu0 %v949, 112
        %v1168 = vpop.permute.xlu0 %1167
        %v1171 = vsel %vm932, %v1166, 0
        %1173 = vmatprep.subr.bf16.mxu0 0
        %1174 = vmatpush1.bf16.msra.mxu0 0
        %1175 = vmatprep.subr.bf16.mxu0 0
        %1176 = vmatpush1.bf16.msra.mxu0 0
        %1177 = vmatprep.subr.bf16.mxu0 0
        %1178 = vmatpush1.bf16.msra.mxu0 0
        %1179 = vmatprep.subr.bf16.mxu0 0
        %1180 = vmatpush1.bf16.msra.mxu0 0
        %1181 = vmatprep.subr.bf16.mxu0 0
        %1182 = vmatpush1.bf16.msra.mxu0 0
        %1183 = vmatprep.subr.bf16.mxu0 0
        %1184 = vmatpush1.bf16.msra.mxu0 0
        %1185 = vmatprep.subr.bf16.mxu0 0
        %1186 = vmatpush1.bf16.msra.mxu0 0
        %1187 = vmatprep.subr.bf16.mxu0 0
        %1188 = vmatpush1.bf16.msra.mxu0 %v1168
        %1189 = vmatprep.subr.bf16.mxu0 0
        %1190 = vmatpush2.bf16.msra.mxu0 0
        %1191 = vmatprep.subr.bf16.mxu0 0
        %1192 = vmatpush2.bf16.msra.mxu0 0
        %1193 = vmatprep.subr.bf16.mxu0 0
        %1194 = vmatpush2.bf16.msra.mxu0 0
        %1195 = vmatprep.subr.bf16.mxu0 0
        %1196 = vmatpush2.bf16.msra.mxu0 0
        %1197 = vmatprep.subr.bf16.mxu0 0
        %1198 = vmatpush2.bf16.msra.mxu0 0
        %1199 = vmatprep.subr.bf16.mxu0 0
        %1200 = vmatpush2.bf16.msra.mxu0 0
        %1201 = vmatprep.subr.bf16.mxu0 0
        %1202 = vmatpush2.bf16.msra.mxu0 0
        %1203 = vmatprep.subr.bf16.mxu0 0
        %1204 = vmatpush2.bf16.msra.mxu0 0
        %1205 = vmatprep.mubr.bf16.mxu0 0
        %1206 = vmatmul.mubr.bf16.gmra.mxu0 %v1171
        %v1207 = vpop.f32.mrf.mxu0
        %v1208 = vadd.f32 0.0, %v1207
        %v1209 = vpop.f32.mrf.mxu0
        %v1210 = vpop.f32.mrf.mxu0
        %v1211 = vpop.f32.mrf.mxu0
        %1212 = vdwg.mxu0
        %v1213 = vpack.c.bf16 %v1208, %v1208
        %1214 = vrot.lane.b32.xlu0 %v879, 104
        %v1215 = vpop.permute.xlu0 %1214
        %1216 = vrot.lane.b32.xlu0 %v884, 104
        %v1217 = vpop.permute.xlu0 %1216
        %v1219 = vsel %vm885, %v1215, 0
        %v1222 = vsel %vm885, %v1217, 0
        %1224 = vmatprep.subr.bf16.mxu0 0
        %1225 = vmatpush1.bf16.xpose.msra.mxu0 0
        %1226 = vmatprep.subr.bf16.mxu0 0
        %1227 = vmatpush1.bf16.xpose.msra.mxu0 0
        %1228 = vmatprep.subr.bf16.mxu0 0
        %1229 = vmatpush1.bf16.xpose.msra.mxu0 0
        %1230 = vmatprep.subr.bf16.mxu0 0
        %1231 = vmatpush1.bf16.xpose.msra.mxu0 0
        %1232 = vmatprep.subr.bf16.mxu0 0
        %1233 = vmatpush1.bf16.xpose.msra.mxu0 0
        %1234 = vmatprep.subr.bf16.mxu0 0
        %1235 = vmatpush1.bf16.xpose.msra.mxu0 0
        %1236 = vmatprep.subr.bf16.mxu0 0
        %1237 = vmatpush1.bf16.xpose.msra.mxu0 0
        %1238 = vmatprep.subr.bf16.mxu0 0
        %1239 = vmatpush1.bf16.xpose.msra.mxu0 %v1222
        %1240 = vmatprep.subr.bf16.mxu0 0
        %1241 = vmatpush2.bf16.xpose.msra.mxu0 0
        %1242 = vmatprep.subr.bf16.mxu0 0
        %1243 = vmatpush2.bf16.xpose.msra.mxu0 0
        %1244 = vmatprep.subr.bf16.mxu0 0
        %1245 = vmatpush2.bf16.xpose.msra.mxu0 0
        %1246 = vmatprep.subr.bf16.mxu0 0
        %1247 = vmatpush2.bf16.xpose.msra.mxu0 0
        %1248 = vmatprep.subr.bf16.mxu0 0
        %1249 = vmatpush2.bf16.xpose.msra.mxu0 0
        %1250 = vmatprep.subr.bf16.mxu0 0
        %1251 = vmatpush2.bf16.xpose.msra.mxu0 0
        %1252 = vmatprep.subr.bf16.mxu0 0
        %1253 = vmatpush2.bf16.xpose.msra.mxu0 0
        %1254 = vmatprep.subr.bf16.mxu0 0
        %1255 = vmatpush2.bf16.xpose.msra.mxu0 0
        %1256 = vmatprep.mubr.bf16.mxu0 0
        %1257 = vmatmul.mubr.bf16.gmra.mxu0 %v1219
        %v1258 = vpop.f32.mrf.mxu0
        %v1259 = vadd.f32 %v873, %v1258
        %v1260 = vpop.f32.mrf.mxu0
        %v1261 = vpop.f32.mrf.mxu0
        %v1262 = vpop.f32.mrf.mxu0
        %1263 = vdwg.mxu0
        %v1264 = vsel %vm932, %v1259, -inf
        %1265 = vmax.xlane.f32.xlu0 %v1264
        %v1266 = vpop.xlane.xlu0 %1265
        %v1267 = vsub.f32 %v1259, %v1266
        %v1268 = vmul.f32 %v1267, 1.442695
        %v1269 = vpow.pop %v1268
        %v1270 = vsel %vm932, %v1269, 0.0
        %1271 = vadd.xlane.f32.xlu0 %v1270
        %v1272 = vpop.xlane.xlu0 %1271
        %v1273 = vrcp.pop %v1272
        %v1274 = vmul.f32 %v1269, %v1273
        %v1275 = vpack.c.bf16 %v1274, %v1274
        %1276 = vrot.lane.b32.xlu0 %v949, 104
        %v1277 = vpop.permute.xlu0 %1276
        %v1280 = vsel %vm932, %v1275, 0
        %1282 = vmatprep.subr.bf16.mxu0 0
        %1283 = vmatpush1.bf16.msra.mxu0 0
        %1284 = vmatprep.subr.bf16.mxu0 0
        %1285 = vmatpush1.bf16.msra.mxu0 0
        %1286 = vmatprep.subr.bf16.mxu0 0
        %1287 = vmatpush1.bf16.msra.mxu0 0
        %1288 = vmatprep.subr.bf16.mxu0 0
        %1289 = vmatpush1.bf16.msra.mxu0 0
        %1290 = vmatprep.subr.bf16.mxu0 0
        %1291 = vmatpush1.bf16.msra.mxu0 0
        %1292 = vmatprep.subr.bf16.mxu0 0
        %1293 = vmatpush1.bf16.msra.mxu0 0
        %1294 = vmatprep.subr.bf16.mxu0 0
        %1295 = vmatpush1.bf16.msra.mxu0 0
        %1296 = vmatprep.subr.bf16.mxu0 0
        %1297 = vmatpush1.bf16.msra.mxu0 %v1277
        %1298 = vmatprep.subr.bf16.mxu0 0
        %1299 = vmatpush2.bf16.msra.mxu0 0
        %1300 = vmatprep.subr.bf16.mxu0 0
        %1301 = vmatpush2.bf16.msra.mxu0 0
        %1302 = vmatprep.subr.bf16.mxu0 0
        %1303 = vmatpush2.bf16.msra.mxu0 0
        %1304 = vmatprep.subr.bf16.mxu0 0
        %1305 = vmatpush2.bf16.msra.mxu0 0
        %1306 = vmatprep.subr.bf16.mxu0 0
        %1307 = vmatpush2.bf16.msra.mxu0 0
        %1308 = vmatprep.subr.bf16.mxu0 0
        %1309 = vmatpush2.bf16.msra.mxu0 0
        %1310 = vmatprep.subr.bf16.mxu0 0
        %1311 = vmatpush2.bf16.msra.mxu0 0
        %1312 = vmatprep.subr.bf16.mxu0 0
        %1313 = vmatpush2.bf16.msra.mxu0 0
        %1314 = vmatprep.mubr.bf16.mxu0 0
        %1315 = vmatmul.mubr.bf16.gmra.mxu0 %v1280
        %v1316 = vpop.f32.mrf.mxu0
        %v1317 = vadd.f32 0.0, %v1316
        %v1318 = vpop.f32.mrf.mxu0
        %v1319 = vpop.f32.mrf.mxu0
        %v1320 = vpop.f32.mrf.mxu0
        %1321 = vdwg.mxu0
        %v1322 = vpack.c.bf16 %v1317, %v1317
        %1324 = vrot.lane.b32.xlu0 %v1104, 8
        %v1325 = vpop.permute.xlu0 %1324
        %1327 = vrot.lane.b32.xlu0 %v1213, 16
        %v1328 = vpop.permute.xlu0 %1327
        %1330 = vrot.lane.b32.xlu0 %v1322, 24
        %v1331 = vpop.permute.xlu0 %1330
        %v1334 = vsel %vm885, %v994, %v1325
        %v1336 = vsel %vm932, %v1334, %v1328
        %vm1337 = vcmask 195584
        %v1339 = vsel %vm1337, %v1336, %v1331
        %v1340 = vld [vmem:[#allocation12] sm:$0xf]
        %v1341 = vld [vmem:[#allocation12 + $0x4] sm:$0xf]
        %v1342 = vld [vmem:[#allocation12 + $0x8] sm:$0xf]
        %v1343 = vld [vmem:[#allocation12 + $0xc] sm:$0xf]
        %v1348 = vunpack.c.l.b16 %v1340
        %v1349 = vunpack.c.l.b16 %v1341
        %v1350 = vunpack.c.l.b16 %v1342
        %v1351 = vunpack.c.l.b16 %v1343
        %v1352 = vpack.c.b16 %v1349, %v1348
        %v1353 = vpack.c.b16 %v1351, %v1350
        %v1356 = vsel %vm824, %v1339, 0
        %1358 = vmatprep.subr.bf16.mxu0 0
        %1359 = vmatpush1.bf16.msra.mxu0 0
        %1360 = vmatprep.subr.bf16.mxu0 0
        %1361 = vmatpush1.bf16.msra.mxu0 0
        %1362 = vmatprep.subr.bf16.mxu0 0
        %1363 = vmatpush1.bf16.msra.mxu0 0
        %1364 = vmatprep.subr.bf16.mxu0 0
        %1365 = vmatpush1.bf16.msra.mxu0 0
        %1366 = vmatprep.subr.bf16.mxu0 0
        %1367 = vmatpush1.bf16.msra.mxu0 0
        %1368 = vmatprep.subr.bf16.mxu0 0
        %1369 = vmatpush1.bf16.msra.mxu0 0
        %1370 = vmatprep.subr.bf16.mxu0 0
        %1371 = vmatpush1.bf16.msra.mxu0 %v1353
        %1372 = vmatprep.subr.bf16.mxu0 0
        %1373 = vmatpush1.bf16.msra.mxu0 %v1352
        %1374 = vmatprep.subr.bf16.mxu0 0
        %1375 = vmatpush2.bf16.msra.mxu0 0
        %1376 = vmatprep.subr.bf16.mxu0 0
        %1377 = vmatpush2.bf16.msra.mxu0 0
        %1378 = vmatprep.subr.bf16.mxu0 0
        %1379 = vmatpush2.bf16.msra.mxu0 0
        %1380 = vmatprep.subr.bf16.mxu0 0
        %1381 = vmatpush2.bf16.msra.mxu0 0
        %1382 = vmatprep.subr.bf16.mxu0 0
        %1383 = vmatpush2.bf16.msra.mxu0 0
        %1384 = vmatprep.subr.bf16.mxu0 0
        %1385 = vmatpush2.bf16.msra.mxu0 0
        %1386 = vmatprep.subr.bf16.mxu0 0
        %1387 = vmatpush2.bf16.msra.mxu0 0
        %1388 = vmatprep.subr.bf16.mxu0 0
        %1389 = vmatpush2.bf16.msra.mxu0 0
        %1390 = vmatprep.mubr.bf16.mxu0 0
        %1391 = vmatmul.mubr.bf16.gmra.mxu0 %v1356
        %v1392 = vpop.f32.mrf.mxu0
        %v1393 = vadd.f32 0.0, %v1392
        %v1394 = vpop.f32.mrf.mxu0
        %v1395 = vpop.f32.mrf.mxu0
        %v1396 = vpop.f32.mrf.mxu0
        %1397 = vdwg.mxu0
        %v1398 = vadd.f32 %v806, %v1393
        %v1399 = vsel %vm824, %v1398, 0.0
        %1400 = vadd.xlane.f32.xlu0 %v1399
        %v1401 = vpop.xlane.xlu0 %1400
        %v1402 = vrcp.pop 32.0
        %v1403 = vmul.f32 %v1401, %v1402
        %v1404 = vsub.f32 %v1398, %v1403
        %v1405 = vmul.f32 %v1404, %v1404
        %v1406 = vsel %vm824, %v1405, 0.0
        %1407 = vadd.xlane.f32.xlu0 %v1406
        %v1408 = vpop.xlane.xlu0 %1407
        %v1409 = vmul.f32 %v1408, %v1402
        %v1410 = vadd.f32 %v1409, 1e-05
        %v1411 = vrsqrt.pop %v1410
        %v1412 = vmul.f32 %v1404, %v1411
        %v1413 = vld [vmem:[#allocation13] sm:$0x1]
        %v1415 = vlaneseq
        %v1416 = vshrl.u32 %v1415, 7
        %v1417 = vsub.s32 0, %v1416
        %v1418 = vrot.slane %v1413, %v1417
        %v1420 = vmul.f32 %v1412, %v1418
        %v1421 = vld [vmem:[#allocation15] sm:$0x1]
        %v1423 = vlaneseq
        %v1424 = vshrl.u32 %v1423, 7
        %v1425 = vsub.s32 0, %v1424
        %v1426 = vrot.slane %v1421, %v1425
        %v1428 = vadd.f32 %v1420, %v1426
        %v1429 = vpack.c.bf16 %v1428, %v1428
        %v1430 = vld [vmem:[%s9] sm:$0xf]
        %v1431 = vld [vmem:[%s9 + $0x4] sm:$0xf]
        %v1432 = vld [vmem:[%s9 + $0x8] sm:$0xf]
        %v1433 = vld [vmem:[%s9 + $0xc] sm:$0xf]
        %v1434 = vld [vmem:[%s10] sm:$0x1]
        %v1436 = vlaneseq
        %v1437 = vshrl.u32 %v1436, 7
        %v1438 = vsub.s32 0, %v1437
        %v1439 = vrot.slane %v1434, %v1438
        %v1445 = vunpack.c.l.b16 %v1430
        %v1446 = vunpack.c.l.b16 %v1431
        %v1447 = vunpack.c.l.b16 %v1432
        %v1448 = vunpack.c.l.b16 %v1433
        %v1449 = vpack.c.b16 %v1446, %v1445
        %v1450 = vpack.c.b16 %v1448, %v1447
        %v1454 = vsel %vm824, %v1429, 0
        %1456 = vmatprep.subr.bf16.mxu0 0
        %1457 = vmatpush1.bf16.msra.mxu0 0
        %1458 = vmatprep.subr.bf16.mxu0 0
        %1459 = vmatpush1.bf16.msra.mxu0 0
        %1460 = vmatprep.subr.bf16.mxu0 0
        %1461 = vmatpush1.bf16.msra.mxu0 0
        %1462 = vmatprep.subr.bf16.mxu0 0
        %1463 = vmatpush1.bf16.msra.mxu0 0
        %1464 = vmatprep.subr.bf16.mxu0 0
        %1465 = vmatpush1.bf16.msra.mxu0 0
        %1466 = vmatprep.subr.bf16.mxu0 0
        %1467 = vmatpush1.bf16.msra.mxu0 0
        %1468 = vmatprep.subr.bf16.mxu0 0
        %1469 = vmatpush1.bf16.msra.mxu0 %v1450
        %1470 = vmatprep.subr.bf16.mxu0 0
        %1471 = vmatpush1.bf16.msra.mxu0 %v1449
        %1472 = vmatprep.subr.bf16.mxu0 0
        %1473 = vmatpush2.bf16.msra.mxu0 0
        %1474 = vmatprep.subr.bf16.mxu0 0
        %1475 = vmatpush2.bf16.msra.mxu0 0
        %1476 = vmatprep.subr.bf16.mxu0 0
        %1477 = vmatpush2.bf16.msra.mxu0 0
        %1478 = vmatprep.subr.bf16.mxu0 0
        %1479 = vmatpush2.bf16.msra.mxu0 0
        %1480 = vmatprep.subr.bf16.mxu0 0
        %1481 = vmatpush2.bf16.msra.mxu0 0
        %1482 = vmatprep.subr.bf16.mxu0 0
        %1483 = vmatpush2.bf16.msra.mxu0 0
        %1484 = vmatprep.subr.bf16.mxu0 0
        %1485 = vmatpush2.bf16.msra.mxu0 0
        %1486 = vmatprep.subr.bf16.mxu0 0
        %1487 = vmatpush2.bf16.msra.mxu0 0
        %1488 = vmatprep.mubr.bf16.mxu0 0
        %1489 = vmatmul.mubr.bf16.gmra.mxu0 %v1454
        %v1490 = vpop.f32.mrf.mxu0
        %v1491 = vadd.f32 %v1439, %v1490
        %v1492 = vpop.f32.mrf.mxu0
        %v1493 = vpop.f32.mrf.mxu0
        %v1494 = vpop.f32.mrf.mxu0
        %1495 = vdwg.mxu0
        %v1496 = vmax.f32 %v1491, 0.0
        %v1497 = vpack.c.bf16 %v1496, %v1496
        %v1498 = vld [vmem:[%s11] sm:$0xf]
        %v1499 = vld [vmem:[%s11 + $0x4] sm:$0xf]
        %v1500 = vld [vmem:[%s11 + $0x8] sm:$0xf]
        %v1501 = vld [vmem:[%s11 + $0xc] sm:$0xf]
        %v1502 = vld [vmem:[%s11 + $0x10] sm:$0xf]
        %v1503 = vld [vmem:[%s11 + $0x14] sm:$0xf]
        %v1504 = vld [vmem:[%s11 + $0x18] sm:$0xf]
        %v1505 = vld [vmem:[%s11 + $0x1c] sm:$0xf]
        %v1506 = vld [vmem:[%s12] sm:$0x1]
        %v1508 = vlaneseq
        %v1509 = vshrl.u32 %v1508, 7
        %v1510 = vsub.s32 0, %v1509
        %v1511 = vrot.slane %v1506, %v1510
        %v1521 = vunpack.c.l.b16 %v1498
        %v1522 = vunpack.c.l.b16 %v1499
        %v1523 = vunpack.c.l.b16 %v1500
        %v1524 = vunpack.c.l.b16 %v1501
        %v1525 = vunpack.c.l.b16 %v1502
        %v1526 = vunpack.c.l.b16 %v1503
        %v1527 = vunpack.c.l.b16 %v1504
        %v1528 = vunpack.c.l.b16 %v1505
        %v1529 = vpack.c.b16 %v1522, %v1521
        %v1530 = vpack.c.b16 %v1524, %v1523
        %v1531 = vpack.c.b16 %v1526, %v1525
        %v1532 = vpack.c.b16 %v1528, %v1527
        %vm1537 = vcmask 523264
        %v1539 = vsel %vm1537, %v1497, 0
        %1541 = vmatprep.subr.bf16.mxu0 0
        %1542 = vmatpush1.bf16.msra.mxu0 0
        %1543 = vmatprep.subr.bf16.mxu0 0
        %1544 = vmatpush1.bf16.msra.mxu0 0
        %1545 = vmatprep.subr.bf16.mxu0 0
        %1546 = vmatpush1.bf16.msra.mxu0 0
        %1547 = vmatprep.subr.bf16.mxu0 0
        %1548 = vmatpush1.bf16.msra.mxu0 0
        %1549 = vmatprep.subr.bf16.mxu0 0
        %1550 = vmatpush1.bf16.msra.mxu0 %v1532
        %1551 = vmatprep.subr.bf16.mxu0 0
        %1552 = vmatpush1.bf16.msra.mxu0 %v1531
        %1553 = vmatprep.subr.bf16.mxu0 0
        %1554 = vmatpush1.bf16.msra.mxu0 %v1530
        %1555 = vmatprep.subr.bf16.mxu0 0
        %1556 = vmatpush1.bf16.msra.mxu0 %v1529
        %1557 = vmatprep.subr.bf16.mxu0 0
        %1558 = vmatpush2.bf16.msra.mxu0 0
        %1559 = vmatprep.subr.bf16.mxu0 0
        %1560 = vmatpush2.bf16.msra.mxu0 0
        %1561 = vmatprep.subr.bf16.mxu0 0
        %1562 = vmatpush2.bf16.msra.mxu0 0
        %1563 = vmatprep.subr.bf16.mxu0 0
        %1564 = vmatpush2.bf16.msra.mxu0 0
        %1565 = vmatprep.subr.bf16.mxu0 0
        %1566 = vmatpush2.bf16.msra.mxu0 0
        %1567 = vmatprep.subr.bf16.mxu0 0
        %1568 = vmatpush2.bf16.msra.mxu0 0
        %1569 = vmatprep.subr.bf16.mxu0 0
        %1570 = vmatpush2.bf16.msra.mxu0 0
        %1571 = vmatprep.subr.bf16.mxu0 0
        %1572 = vmatpush2.bf16.msra.mxu0 0
        %1573 = vmatprep.mubr.bf16.mxu0 0
        %1574 = vmatmul.mubr.bf16.gmra.mxu0 %v1539
        %v1575 = vpop.f32.mrf.mxu0
        %v1576 = vadd.f32 %v1511, %v1575
        %v1577 = vpop.f32.mrf.mxu0
        %v1578 = vpop.f32.mrf.mxu0
        %v1579 = vpop.f32.mrf.mxu0
        %1580 = vdwg.mxu0
        %v1581 = vadd.f32 %v1428, %v1576
        %v1582 = vsel %vm824, %v1581, 0.0
        %1583 = vadd.xlane.f32.xlu0 %v1582
        %v1584 = vpop.xlane.xlu0 %1583
        %v1585 = vmul.f32 %v1584, %v1402
        %v1586 = vsub.f32 %v1581, %v1585
        %v1587 = vmul.f32 %v1586, %v1586
        %v1588 = vsel %vm824, %v1587, 0.0
        %1589 = vadd.xlane.f32.xlu0 %v1588
        %v1590 = vpop.xlane.xlu0 %1589
        %v1591 = vmul.f32 %v1590, %v1402
        %v1592 = vadd.f32 %v1591, 1e-05
        %v1593 = vrsqrt.pop %v1592
        %v1594 = vmul.f32 %v1586, %v1593
        %v1595 = vld [vmem:[%s13] sm:$0x1]
        %v1597 = vlaneseq
        %v1598 = vshrl.u32 %v1597, 7
        %v1599 = vsub.s32 0, %v1598
        %v1600 = vrot.slane %v1595, %v1599
        %v1602 = vmul.f32 %v1594, %v1600
        %v1603 = vld [vmem:[%s14] sm:$0x1]
        %v1605 = vlaneseq
        %v1606 = vshrl.u32 %v1605, 7
        %v1607 = vsub.s32 0, %v1606
        %v1608 = vrot.slane %v1603, %v1607
        %v1610 = vadd.f32 %v1602, %v1608
        %1611 = vst.msk [vmem:[%s641] sm:$0xff] %vm824, %v1610
        %s1612 = sand.u32 %s389, 1
        %s1613 = scalar_lea.sflag [#allocation6], %s1612
        %s1614 = sand.u32 %s389, 1
        %s1615 = smul.addr %s1614, 8
        %s1616 = scalar_lea.vmem [#allocation16], %s1615
        // Predicated region
        $region113: #{tpu_custom_call.1} parent=79 // pred_check
          %p1617 = pneg %p399
        $region114: #{tpu_custom_call.1} parent=79 // pred_check_branch
          %1619 = sbr.rel (%p1617) target = $region116
        $region115: #{tpu_custom_call.1} parent=79 // pred_region
          %s1621 = ssub.s32 128, 128
          %1622 = vsyncadd %s1613, %s1621
          %s1623 = smul.addr %s39, 2
          %s1624 = sadd.s32 %s40, %s1623
          %s1625 = smul.addr %s1624, 128
          %s1626 = scalar_lea.hbm %s15, %s1625
          %s1628 = sshll.u32 %s1616, 4
          %s1629 = int_to_ptr.vmem [resolvable:$true] %s1628
          %1631 = dma.vmem_to_hbm [thread:$0]  %s1629, 128, %s1626, %s1613
        $region116: #{tpu_custom_call.1} parent=79 // pred_fallthru
          _
      $region80: #{tpu_custom_call.1} parent=5 // pred_fallthru
        _
      %p1632 = scmp.le.s32.totalorder 2, %s30
      // Predicated region
      $region117: #{tpu_custom_call.1} parent=5 // pred_check
        %p1633 = pneg %p1632
      $region118: #{tpu_custom_call.1} parent=5 // pred_check_branch
        %1635 = sbr.rel (%p1633) target = $region120
      $region119: #{tpu_custom_call.1} parent=5 // pred_region
        %s1636 = ssub.s32 %s30, 2
        // Predicated region
        $region121: #{tpu_custom_call.1} parent=119 // pred_check
          %p1637 = pneg %p405
        $region122: #{tpu_custom_call.1} parent=119 // pred_check_branch
          %1639 = sbr.rel (%p1637) target = $region124
        $region123: #{tpu_custom_call.1} parent=119 // pred_region
          %s1640 = sand.u32 %s390, 1
          %s1641 = scalar_lea.sflag [#allocation6], %s1640
          %s1642 = sand.u32 %s390, 1
          %s1643 = smul.addr %s1642, 8
          %s1644 = scalar_lea.vmem [#allocation16], %s1643
          %1645 = dma.done %s1641, 128
        $region124: #{tpu_custom_call.1} parent=119 // pred_fallthru
          _
      $region120: #{tpu_custom_call.1} parent=5 // pred_fallthru
        _
    $region6: #{tpu_custom_call.1} parent=1 // loop_footer
      %s34 = sadd.s32 1, %s30
    $region7: #{tpu_custom_call.1} parent=1 // loop_footer_branch
      %29 = sbr.rel target = $region3
    $region8: #{tpu_custom_call.1} parent=1 // loop_exit
      _
    %1646 = vsyncpa [#allocation5], 1
    %s1647 = scalar_lea.sflag [#allocation5], 1
    %1648 = vsyncpa %s1647, 1
    %1649 = vsyncpa [#allocation8], 1
    %1650 = vsyncpa [#allocation11], 1
    %1651 = vsyncpa [#allocation14], 1
    %1652 = vsyncpa [#allocation6], 1
    %s1653 = scalar_lea.sflag [#allocation6], 1
    %1654 = vsyncpa %s1653, 1

</llo_original>
